<compile_context>
chip_gen: v7x
topology: tpu7x:2x2x1
jax: 0.10.0
libtpu: 0.0.40
codegen_flags: <defaults>
</compile_context>

<pallas_src>
import math

import jax
import jax.numpy as jnp
from jax import lax
from jax.experimental import pallas as pl
from jax.experimental.pallas import tpu as pltpu  # noqa: F401  (TPU backend assumed)


# ----------------------------------------------------------------------------
# Fused kernel builder
# ----------------------------------------------------------------------------
def _make_fused_lstm_fc_kernel(Bp, T, D_in, H, L):
    """Fused (multi-layer LSTM -> last hidden -> Linear) kernel.

    Bp, T, D_in, H, L are Python ints; all slices are static and the wavefront
    over (layer, time) is unrolled at trace time.
    """
    H4 = 4 * H

    def kernel(x_ref, wih0_ref, wih_rest_ref, whh_ref, b_ref,
               fcw_ref, fcb_ref, out_ref):
        # Hoist weight/bias tile loads out of the recurrence.
        whh = [whh_ref[l] for l in range(L)]                 # each (H, 4H)
        bias = [b_ref[l] for l in range(L)]                  # each (1, 4H)
        wih_rest = [wih_rest_ref[l] for l in range(max(L - 1, 0))]  # (H, 4H)

        # Hoisted layer-0 input projection for ALL timesteps: one matmul,
        # off the serial recurrence path. Row block t*Bp:(t+1)*Bp is timestep t
        # (sublane-aligned since Bp = 8).
        proj0 = jnp.dot(x_ref[...], wih0_ref[...],
                        preferred_element_type=jnp.float32) + bias[0]  # (T*Bp, 4H)

        h = [jnp.zeros((Bp, H), jnp.float32) for _ in range(L)]
        c = [jnp.zeros((Bp, H), jnp.float32) for _ in range(L)]
        prev_out = [None] * L   # prev_out[l]: h of layer l produced in the previous wave

        # Wavefront: wave tau runs layer l at timestep t = tau - l (if valid).
        # Work items within a wave are mutually independent -> MXU/EUP pipeline.
        for tau in range(T + L - 1):
            new_out = [None] * L
            for l in range(L):
                t = tau - l
                if not (0 <= t < T):
                    continue
                if l == 0:
                    pre = proj0[t * Bp:(t + 1) * Bp, :]                    # (Bp, 4H)
                else:
                    # per-step input projection from previous layer's h (last wave)
                    pre = jnp.dot(prev_out[l - 1], wih_rest[l - 1],
                                  preferred_element_type=jnp.float32) + bias[l]
                g = pre + jnp.dot(h[l], whh[l],
                                  preferred_element_type=jnp.float32)      # (Bp, 4H)

                # Fused nonlinearities: 2 whole-vreg EUP passes, then lane slices.
                sig = jax.nn.sigmoid(g)
                tnh = jnp.tanh(g)
                i_g = sig[:, 0 * H:1 * H]
                f_g = sig[:, 1 * H:2 * H]
                g_g = tnh[:, 2 * H:3 * H]
                o_g = sig[:, 3 * H:4 * H]

                c[l] = f_g * c[l] + i_g * g_g
                h[l] = o_g * jnp.tanh(c[l])
                new_out[l] = h[l]
            prev_out = new_out

        # Dropout(0.3): identity in eval/inference mode.
        # TODO(synk): training-mode dropout (random mask + 1/(1-p) scale) not implemented.
        out = jnp.dot(h[L - 1], fcw_ref[...],
                      preferred_element_type=jnp.float32) + fcb_ref[...]
        out_ref[...] = out.astype(out_ref.dtype)

    return kernel


# ----------------------------------------------------------------------------
# Wrapper
# ----------------------------------------------------------------------------
@jax.jit
def lstm_model_forward(x, params):
    """Forward pass of LSTMModel.

    x: (B, T, input_size)  -- batch_first, matching PyTorch.
    returns: (B, output_size)
    """
    B, T, D_in = x.shape
    wih0 = params["wih0_t"]           # (D_in, 4H)
    wih_rest = params["wih_rest_t"]   # (max(L-1,1), H, 4H)
    whh = params["whh_t"]             # (L, H, 4H)
    bias = params["bias"]             # (L, 1, 4H)
    fcw = params["fc_w_t"]            # (H, O)
    fcb = params["fc_b"]              # (1, O)
    L, H, H4 = whh.shape
    O = fcw.shape[1]

    # Pad batch to a full sublane tile (multiple of 8); padded rows are zero
    # and simply discarded after the kernel.
    Bp = ((B + 7) // 8) * 8

    # Time-major + batch pad in the wrapper (cheap, fused by XLA):
    # (B,T,D) -> (T,B,D) -> (T,Bp,D) -> (T*Bp, D), row index = t*Bp + b.
    x_tm = jnp.transpose(x, (1, 0, 2))
    x_tm = jnp.pad(x_tm, ((0, 0), (0, Bp - B), (0, 0)))
    x2 = x_tm.reshape(T * Bp, D_in)

    kernel = _make_fused_lstm_fc_kernel(Bp, T, D_in, H, L)
    out_pad = pl.pallas_call(
        kernel,
        out_shape=jax.ShapeDtypeStruct((Bp, O), jnp.float32),
        in_specs=[
            pl.BlockSpec((T * Bp, D_in), lambda: (0, 0)),
            pl.BlockSpec((D_in, H4), lambda: (0, 0)),
            pl.BlockSpec(wih_rest.shape, lambda: (0, 0, 0)),
            pl.BlockSpec((L, H, H4), lambda: (0, 0, 0)),
            pl.BlockSpec((L, 1, H4), lambda: (0, 0, 0)),
            pl.BlockSpec((H, O), lambda: (0, 0)),
            pl.BlockSpec((1, O), lambda: (0, 0)),
        ],
        out_specs=pl.BlockSpec((Bp, O), lambda: (0, 0)),
    )(x2, wih0, wih_rest, whh, bias, fcw, fcb)
    return out_pad[:B, :]


# ----------------------------------------------------------------------------
# Deterministic parameter init (PyTorch-style uniform(-1/sqrt(H), 1/sqrt(H)))
# ----------------------------------------------------------------------------
def init_params(key, input_size, hidden_size, num_layers, output_size):
    H = hidden_size
    bound = 1.0 / math.sqrt(H)
    wih0 = None
    wih_rest, whh_all, bias_all = [], [], []
    for layer in range(num_layers):
        d_in = input_size if layer == 0 else H
        key, k1, k2, k3, k4 = jax.random.split(key, 5)
        w_ih = jax.random.uniform(k1, (4 * H, d_in), jnp.float32, -bound, bound)
        w_hh = jax.random.uniform(k2, (4 * H, H), jnp.float32, -bound, bound)
        b_ih = jax.random.uniform(k3, (4 * H,), jnp.float32, -bound, bound)
        b_hh = jax.random.uniform(k4, (4 * H,), jnp.float32, -bound, bound)
        if layer == 0:
            wih0 = w_ih.T                              # (d_in, 4H)
        else:
            wih_rest.append(w_ih.T)                    # (H, 4H)
        whh_all.append(w_hh.T)                         # (H, 4H)
        bias_all.append((b_ih + b_hh)[None, :])        # (1, 4H)

    if wih_rest:
        wih_rest_t = jnp.stack(wih_rest)               # (L-1, H, 4H)
    else:
        wih_rest_t = jnp.zeros((1, H, 4 * H), jnp.float32)   # dummy, unused

    key, k5, k6 = jax.random.split(key, 3)
    fc_w = jax.random.uniform(k5, (output_size, H), jnp.float32, -bound, bound)
    fc_b = jax.random.uniform(k6, (output_size,), jnp.float32, -bound, bound)
    return {
        "wih0_t": wih0,
        "wih_rest_t": wih_rest_t,
        "whh_t": jnp.stack(whh_all),                   # (L, H, 4H)
        "bias": jnp.stack(bias_all),                   # (L, 1, 4H)
        "fc_w_t": fc_w.T,                              # (H, O)
        "fc_b": fc_b[None, :],                         # (1, O)
    }


# ----------------------------------------------------------------------------
# Pure-JAX reference (for correctness check)
# ----------------------------------------------------------------------------
def reference_forward(x, params):
    B, T, _ = x.shape
    whh = params["whh_t"]
    L, H, _ = whh.shape
    h_seq = jnp.transpose(x, (1, 0, 2))  # (T, B, D)
    for l in range(L):
        wih = params["wih0_t"] if l == 0 else params["wih_rest_t"][l - 1]
        whh_l = whh[l]
        b_l = params["bias"][l]
        h0 = jnp.zeros((B, H), jnp.float32)
        c0 = jnp.zeros((B, H), jnp.float32)

        def step(carry, x_t, wih=wih, whh_l=whh_l, b_l=b_l):
            h, c = carry
            g = x_t @ wih + h @ whh_l + b_l
            i = jax.nn.sigmoid(g[:, :H])
            f = jax.nn.sigmoid(g[:, H:2 * H])
            gg = jnp.tanh(g[:, 2 * H:3 * H])
            o = jax.nn.sigmoid(g[:, 3 * H:])
            c = f * c + i * gg
            h = o * jnp.tanh(c)
            return (h, c), h

        (_, _), h_seq = lax.scan(step, (h0, c0), h_seq)
    return h_seq[-1] @ params["fc_w_t"] + params["fc_b"]


# ----------------------------------------------------------------------------
# Main
# ----------------------------------------------------------------------------
if __name__ == "__main__":
    batch, seq_len = 2, 8
    input_size, hidden_size, num_layers, output_size = 4, 32, 2, 3

    key = jax.random.PRNGKey(0)
    key, xkey, pkey = jax.random.split(key, 3)
    x = jax.random.normal(xkey, (batch, seq_len, input_size), jnp.float32)
    params = init_params(pkey, input_size, hidden_size, num_layers, output_size)

    out = jax.block_until_ready(lstm_model_forward(x, params))
    ref = jax.block_until_ready(reference_forward(x, params))

    assert out.shape == (batch, output_size), out.shape
    assert jnp.allclose(out, ref, atol=1e-4, rtol=1e-4), (out, ref)

    print("KERNEL_OK")
</pallas_src>

<mosaic_0001>
module attributes {stable_mosaic.version = 11 : i64} {
  func.func @kernel(%arg0: memref<64x4xf32, #tpu.memory_space<vmem>>, %arg1: memref<4x128xf32, #tpu.memory_space<vmem>>, %arg2: memref<1x32x128xf32, #tpu.memory_space<vmem>>, %arg3: memref<2x32x128xf32, #tpu.memory_space<vmem>>, %arg4: memref<2x1x128xf32, #tpu.memory_space<vmem>>, %arg5: memref<32x3xf32, #tpu.memory_space<vmem>>, %arg6: memref<1x3xf32, #tpu.memory_space<vmem>>, %arg7: memref<8x3xf32, #tpu.memory_space<vmem>>) attributes {dimension_semantics = [], scalar_prefetch = 0 : i64, scratch_operands = 0 : i64, tpu.core_type = #tpu.core_type<tc>} {
    %c0 = arith.constant 0 : index
    %c0_0 = arith.constant 0 : index
    %c0_1 = arith.constant 0 : index
    %0 = vector.load %arg3[%c0, %c0_0, %c0_1] : memref<2x32x128xf32, #tpu.memory_space<vmem>>, vector<1x32x128xf32>
    %1 = vector.shape_cast %0 : vector<1x32x128xf32> to vector<32x128xf32>
    %c1 = arith.constant 1 : index
    %c0_2 = arith.constant 0 : index
    %c0_3 = arith.constant 0 : index
    %2 = vector.load %arg3[%c1, %c0_2, %c0_3] : memref<2x32x128xf32, #tpu.memory_space<vmem>>, vector<1x32x128xf32>
    %3 = vector.shape_cast %2 : vector<1x32x128xf32> to vector<32x128xf32>
    %c0_4 = arith.constant 0 : index
    %c0_5 = arith.constant 0 : index
    %c0_6 = arith.constant 0 : index
    %4 = vector.load %arg4[%c0_4, %c0_5, %c0_6] : memref<2x1x128xf32, #tpu.memory_space<vmem>>, vector<1x1x128xf32>
    %5 = vector.shape_cast %4 : vector<1x1x128xf32> to vector<1x128xf32>
    %c1_7 = arith.constant 1 : index
    %c0_8 = arith.constant 0 : index
    %c0_9 = arith.constant 0 : index
    %6 = vector.load %arg4[%c1_7, %c0_8, %c0_9] : memref<2x1x128xf32, #tpu.memory_space<vmem>>, vector<1x1x128xf32>
    %7 = vector.shape_cast %6 : vector<1x1x128xf32> to vector<1x128xf32>
    %c0_10 = arith.constant 0 : index
    %c0_11 = arith.constant 0 : index
    %c0_12 = arith.constant 0 : index
    %8 = vector.load %arg2[%c0_10, %c0_11, %c0_12] : memref<1x32x128xf32, #tpu.memory_space<vmem>>, vector<1x32x128xf32>
    %9 = vector.shape_cast %8 : vector<1x32x128xf32> to vector<32x128xf32>
    %c0_13 = arith.constant 0 : index
    %c0_14 = arith.constant 0 : index
    %10 = vector.load %arg0[%c0_13, %c0_14] : memref<64x4xf32, #tpu.memory_space<vmem>>, vector<64x4xf32>
    %c0_15 = arith.constant 0 : index
    %c0_16 = arith.constant 0 : index
    %11 = vector.load %arg1[%c0_15, %c0_16] : memref<4x128xf32, #tpu.memory_space<vmem>>, vector<4x128xf32>
    %cst = arith.constant dense<0.000000e+00> : vector<64x128xf32>
    %12 = tpu.matmul %10, %11, %cst {dimension_numbers = #tpu.dot_dimension_numbers<[1], [0], [0], [1], [0, 0, 1, 1], [], []>} : vector<64x4xf32>, vector<4x128xf32>, vector<64x128xf32> -> vector<64x128xf32>
    %13 = vector.broadcast %5 : vector<1x128xf32> to vector<64x128xf32>
    %14 = arith.addf %12, %13 : vector<64x128xf32>
    %cst_17 = arith.constant 0.000000e+00 : f32
    %15 = vector.broadcast %cst_17 : f32 to vector<8x32xf32>
    %cst_18 = arith.constant 0.000000e+00 : f32
    %16 = vector.broadcast %cst_18 : f32 to vector<8x32xf32>
    %cst_19 = arith.constant 0.000000e+00 : f32
    %17 = vector.broadcast %cst_19 : f32 to vector<8x32xf32>
    %cst_20 = arith.constant 0.000000e+00 : f32
    %18 = vector.broadcast %cst_20 : f32 to vector<8x32xf32>
    %19 = vector.extract_strided_slice %14 {offsets = [0, 0], sizes = [8, 128], strides = [1, 1]} : vector<64x128xf32> to vector<8x128xf32>
    %cst_21 = arith.constant dense<0.000000e+00> : vector<8x128xf32>
    %20 = tpu.matmul %15, %1, %cst_21 {dimension_numbers = #tpu.dot_dimension_numbers<[1], [0], [0], [1], [0, 0, 1, 1], [], []>} : vector<8x32xf32>, vector<32x128xf32>, vector<8x128xf32> -> vector<8x128xf32>
    %21 = arith.addf %19, %20 : vector<8x128xf32>
    %22 = arith.negf %21 : vector<8x128xf32>
    %23 = math.exp %22 : vector<8x128xf32>
    %cst_22 = arith.constant 1.000000e+00 : f32
    %24 = vector.broadcast %cst_22 : f32 to vector<8x128xf32>
    %25 = arith.addf %24, %23 : vector<8x128xf32>
    %26 = arith.divf %24, %25 : vector<8x128xf32>
    %27 = math.tanh %21 : vector<8x128xf32>
    %28 = vector.extract_strided_slice %26 {offsets = [0, 0], sizes = [8, 32], strides = [1, 1]} : vector<8x128xf32> to vector<8x32xf32>
    %29 = vector.extract_strided_slice %26 {offsets = [0, 32], sizes = [8, 32], strides = [1, 1]} : vector<8x128xf32> to vector<8x32xf32>
    %30 = vector.extract_strided_slice %27 {offsets = [0, 64], sizes = [8, 32], strides = [1, 1]} : vector<8x128xf32> to vector<8x32xf32>
    %31 = vector.extract_strided_slice %26 {offsets = [0, 96], sizes = [8, 32], strides = [1, 1]} : vector<8x128xf32> to vector<8x32xf32>
    %32 = arith.mulf %29, %17 : vector<8x32xf32>
    %33 = arith.mulf %28, %30 : vector<8x32xf32>
    %34 = arith.addf %32, %33 : vector<8x32xf32>
    %35 = math.tanh %34 : vector<8x32xf32>
    %36 = arith.mulf %31, %35 : vector<8x32xf32>
    %37 = vector.extract_strided_slice %14 {offsets = [8, 0], sizes = [8, 128], strides = [1, 1]} : vector<64x128xf32> to vector<8x128xf32>
    %cst_23 = arith.constant dense<0.000000e+00> : vector<8x128xf32>
    %38 = tpu.matmul %36, %1, %cst_23 {dimension_numbers = #tpu.dot_dimension_numbers<[1], [0], [0], [1], [0, 0, 1, 1], [], []>} : vector<8x32xf32>, vector<32x128xf32>, vector<8x128xf32> -> vector<8x128xf32>
    %39 = arith.addf %37, %38 : vector<8x128xf32>
    %40 = arith.negf %39 : vector<8x128xf32>
    %41 = math.exp %40 : vector<8x128xf32>
    %cst_24 = arith.constant 1.000000e+00 : f32
    %42 = vector.broadcast %cst_24 : f32 to vector<8x128xf32>
    %43 = arith.addf %42, %41 : vector<8x128xf32>
    %44 = arith.divf %42, %43 : vector<8x128xf32>
    %45 = math.tanh %39 : vector<8x128xf32>
    %46 = vector.extract_strided_slice %44 {offsets = [0, 0], sizes = [8, 32], strides = [1, 1]} : vector<8x128xf32> to vector<8x32xf32>
    %47 = vector.extract_strided_slice %44 {offsets = [0, 32], sizes = [8, 32], strides = [1, 1]} : vector<8x128xf32> to vector<8x32xf32>
    %48 = vector.extract_strided_slice %45 {offsets = [0, 64], sizes = [8, 32], strides = [1, 1]} : vector<8x128xf32> to vector<8x32xf32>
    %49 = vector.extract_strided_slice %44 {offsets = [0, 96], sizes = [8, 32], strides = [1, 1]} : vector<8x128xf32> to vector<8x32xf32>
    %50 = arith.mulf %47, %34 : vector<8x32xf32>
    %51 = arith.mulf %46, %48 : vector<8x32xf32>
    %52 = arith.addf %50, %51 : vector<8x32xf32>
    %53 = math.tanh %52 : vector<8x32xf32>
    %54 = arith.mulf %49, %53 : vector<8x32xf32>
    %cst_25 = arith.constant dense<0.000000e+00> : vector<8x128xf32>
    %55 = tpu.matmul %36, %9, %cst_25 {dimension_numbers = #tpu.dot_dimension_numbers<[1], [0], [0], [1], [0, 0, 1, 1], [], []>} : vector<8x32xf32>, vector<32x128xf32>, vector<8x128xf32> -> vector<8x128xf32>
    %56 = vector.broadcast %7 : vector<1x128xf32> to vector<8x128xf32>
    %57 = arith.addf %55, %56 : vector<8x128xf32>
    %cst_26 = arith.constant dense<0.000000e+00> : vector<8x128xf32>
    %58 = tpu.matmul %16, %3, %cst_26 {dimension_numbers = #tpu.dot_dimension_numbers<[1], [0], [0], [1], [0, 0, 1, 1], [], []>} : vector<8x32xf32>, vector<32x128xf32>, vector<8x128xf32> -> vector<8x128xf32>
    %59 = arith.addf %57, %58 : vector<8x128xf32>
    %60 = arith.negf %59 : vector<8x128xf32>
    %61 = math.exp %60 : vector<8x128xf32>
    %cst_27 = arith.constant 1.000000e+00 : f32
    %62 = vector.broadcast %cst_27 : f32 to vector<8x128xf32>
    %63 = arith.addf %62, %61 : vector<8x128xf32>
    %64 = arith.divf %62, %63 : vector<8x128xf32>
    %65 = math.tanh %59 : vector<8x128xf32>
    %66 = vector.extract_strided_slice %64 {offsets = [0, 0], sizes = [8, 32], strides = [1, 1]} : vector<8x128xf32> to vector<8x32xf32>
    %67 = vector.extract_strided_slice %64 {offsets = [0, 32], sizes = [8, 32], strides = [1, 1]} : vector<8x128xf32> to vector<8x32xf32>
    %68 = vector.extract_strided_slice %65 {offsets = [0, 64], sizes = [8, 32], strides = [1, 1]} : vector<8x128xf32> to vector<8x32xf32>
    %69 = vector.extract_strided_slice %64 {offsets = [0, 96], sizes = [8, 32], strides = [1, 1]} : vector<8x128xf32> to vector<8x32xf32>
    %70 = arith.mulf %67, %18 : vector<8x32xf32>
    %71 = arith.mulf %66, %68 : vector<8x32xf32>
    %72 = arith.addf %70, %71 : vector<8x32xf32>
    %73 = math.tanh %72 : vector<8x32xf32>
    %74 = arith.mulf %69, %73 : vector<8x32xf32>
    %75 = vector.extract_strided_slice %14 {offsets = [16, 0], sizes = [8, 128], strides = [1, 1]} : vector<64x128xf32> to vector<8x128xf32>
    %cst_28 = arith.constant dense<0.000000e+00> : vector<8x128xf32>
    %76 = tpu.matmul %54, %1, %cst_28 {dimension_numbers = #tpu.dot_dimension_numbers<[1], [0], [0], [1], [0, 0, 1, 1], [], []>} : vector<8x32xf32>, vector<32x128xf32>, vector<8x128xf32> -> vector<8x128xf32>
    %77 = arith.addf %75, %76 : vector<8x128xf32>
    %78 = arith.negf %77 : vector<8x128xf32>
    %79 = math.exp %78 : vector<8x128xf32>
    %cst_29 = arith.constant 1.000000e+00 : f32
    %80 = vector.broadcast %cst_29 : f32 to vector<8x128xf32>
    %81 = arith.addf %80, %79 : vector<8x128xf32>
    %82 = arith.divf %80, %81 : vector<8x128xf32>
    %83 = math.tanh %77 : vector<8x128xf32>
    %84 = vector.extract_strided_slice %82 {offsets = [0, 0], sizes = [8, 32], strides = [1, 1]} : vector<8x128xf32> to vector<8x32xf32>
    %85 = vector.extract_strided_slice %82 {offsets = [0, 32], sizes = [8, 32], strides = [1, 1]} : vector<8x128xf32> to vector<8x32xf32>
    %86 = vector.extract_strided_slice %83 {offsets = [0, 64], sizes = [8, 32], strides = [1, 1]} : vector<8x128xf32> to vector<8x32xf32>
    %87 = vector.extract_strided_slice %82 {offsets = [0, 96], sizes = [8, 32], strides = [1, 1]} : vector<8x128xf32> to vector<8x32xf32>
    %88 = arith.mulf %85, %52 : vector<8x32xf32>
    %89 = arith.mulf %84, %86 : vector<8x32xf32>
    %90 = arith.addf %88, %89 : vector<8x32xf32>
    %91 = math.tanh %90 : vector<8x32xf32>
    %92 = arith.mulf %87, %91 : vector<8x32xf32>
    %cst_30 = arith.constant dense<0.000000e+00> : vector<8x128xf32>
    %93 = tpu.matmul %54, %9, %cst_30 {dimension_numbers = #tpu.dot_dimension_numbers<[1], [0], [0], [1], [0, 0, 1, 1], [], []>} : vector<8x32xf32>, vector<32x128xf32>, vector<8x128xf32> -> vector<8x128xf32>
    %94 = vector.broadcast %7 : vector<1x128xf32> to vector<8x128xf32>
    %95 = arith.addf %93, %94 : vector<8x128xf32>
    %cst_31 = arith.constant dense<0.000000e+00> : vector<8x128xf32>
    %96 = tpu.matmul %74, %3, %cst_31 {dimension_numbers = #tpu.dot_dimension_numbers<[1], [0], [0], [1], [0, 0, 1, 1], [], []>} : vector<8x32xf32>, vector<32x128xf32>, vector<8x128xf32> -> vector<8x128xf32>
    %97 = arith.addf %95, %96 : vector<8x128xf32>
    %98 = arith.negf %97 : vector<8x128xf32>
    %99 = math.exp %98 : vector<8x128xf32>
    %cst_32 = arith.constant 1.000000e+00 : f32
    %100 = vector.broadcast %cst_32 : f32 to vector<8x128xf32>
    %101 = arith.addf %100, %99 : vector<8x128xf32>
    %102 = arith.divf %100, %101 : vector<8x128xf32>
    %103 = math.tanh %97 : vector<8x128xf32>
    %104 = vector.extract_strided_slice %102 {offsets = [0, 0], sizes = [8, 32], strides = [1, 1]} : vector<8x128xf32> to vector<8x32xf32>
    %105 = vector.extract_strided_slice %102 {offsets = [0, 32], sizes = [8, 32], strides = [1, 1]} : vector<8x128xf32> to vector<8x32xf32>
    %106 = vector.extract_strided_slice %103 {offsets = [0, 64], sizes = [8, 32], strides = [1, 1]} : vector<8x128xf32> to vector<8x32xf32>
    %107 = vector.extract_strided_slice %102 {offsets = [0, 96], sizes = [8, 32], strides = [1, 1]} : vector<8x128xf32> to vector<8x32xf32>
    %108 = arith.mulf %105, %72 : vector<8x32xf32>
    %109 = arith.mulf %104, %106 : vector<8x32xf32>
    %110 = arith.addf %108, %109 : vector<8x32xf32>
    %111 = math.tanh %110 : vector<8x32xf32>
    %112 = arith.mulf %107, %111 : vector<8x32xf32>
    %113 = vector.extract_strided_slice %14 {offsets = [24, 0], sizes = [8, 128], strides = [1, 1]} : vector<64x128xf32> to vector<8x128xf32>
    %cst_33 = arith.constant dense<0.000000e+00> : vector<8x128xf32>
    %114 = tpu.matmul %92, %1, %cst_33 {dimension_numbers = #tpu.dot_dimension_numbers<[1], [0], [0], [1], [0, 0, 1, 1], [], []>} : vector<8x32xf32>, vector<32x128xf32>, vector<8x128xf32> -> vector<8x128xf32>
    %115 = arith.addf %113, %114 : vector<8x128xf32>
    %116 = arith.negf %115 : vector<8x128xf32>
    %117 = math.exp %116 : vector<8x128xf32>
    %cst_34 = arith.constant 1.000000e+00 : f32
    %118 = vector.broadcast %cst_34 : f32 to vector<8x128xf32>
    %119 = arith.addf %118, %117 : vector<8x128xf32>
    %120 = arith.divf %118, %119 : vector<8x128xf32>
    %121 = math.tanh %115 : vector<8x128xf32>
    %122 = vector.extract_strided_slice %120 {offsets = [0, 0], sizes = [8, 32], strides = [1, 1]} : vector<8x128xf32> to vector<8x32xf32>
    %123 = vector.extract_strided_slice %120 {offsets = [0, 32], sizes = [8, 32], strides = [1, 1]} : vector<8x128xf32> to vector<8x32xf32>
    %124 = vector.extract_strided_slice %121 {offsets = [0, 64], sizes = [8, 32], strides = [1, 1]} : vector<8x128xf32> to vector<8x32xf32>
    %125 = vector.extract_strided_slice %120 {offsets = [0, 96], sizes = [8, 32], strides = [1, 1]} : vector<8x128xf32> to vector<8x32xf32>
    %126 = arith.mulf %123, %90 : vector<8x32xf32>
    %127 = arith.mulf %122, %124 : vector<8x32xf32>
    %128 = arith.addf %126, %127 : vector<8x32xf32>
    %129 = math.tanh %128 : vector<8x32xf32>
    %130 = arith.mulf %125, %129 : vector<8x32xf32>
    %cst_35 = arith.constant dense<0.000000e+00> : vector<8x128xf32>
    %131 = tpu.matmul %92, %9, %cst_35 {dimension_numbers = #tpu.dot_dimension_numbers<[1], [0], [0], [1], [0, 0, 1, 1], [], []>} : vector<8x32xf32>, vector<32x128xf32>, vector<8x128xf32> -> vector<8x128xf32>
    %132 = vector.broadcast %7 : vector<1x128xf32> to vector<8x128xf32>
    %133 = arith.addf %131, %132 : vector<8x128xf32>
    %cst_36 = arith.constant dense<0.000000e+00> : vector<8x128xf32>
    %134 = tpu.matmul %112, %3, %cst_36 {dimension_numbers = #tpu.dot_dimension_numbers<[1], [0], [0], [1], [0, 0, 1, 1], [], []>} : vector<8x32xf32>, vector<32x128xf32>, vector<8x128xf32> -> vector<8x128xf32>
    %135 = arith.addf %133, %134 : vector<8x128xf32>
    %136 = arith.negf %135 : vector<8x128xf32>
    %137 = math.exp %136 : vector<8x128xf32>
    %cst_37 = arith.constant 1.000000e+00 : f32
    %138 = vector.broadcast %cst_37 : f32 to vector<8x128xf32>
    %139 = arith.addf %138, %137 : vector<8x128xf32>
    %140 = arith.divf %138, %139 : vector<8x128xf32>
    %141 = math.tanh %135 : vector<8x128xf32>
    %142 = vector.extract_strided_slice %140 {offsets = [0, 0], sizes = [8, 32], strides = [1, 1]} : vector<8x128xf32> to vector<8x32xf32>
    %143 = vector.extract_strided_slice %140 {offsets = [0, 32], sizes = [8, 32], strides = [1, 1]} : vector<8x128xf32> to vector<8x32xf32>
    %144 = vector.extract_strided_slice %141 {offsets = [0, 64], sizes = [8, 32], strides = [1, 1]} : vector<8x128xf32> to vector<8x32xf32>
    %145 = vector.extract_strided_slice %140 {offsets = [0, 96], sizes = [8, 32], strides = [1, 1]} : vector<8x128xf32> to vector<8x32xf32>
    %146 = arith.mulf %143, %110 : vector<8x32xf32>
    %147 = arith.mulf %142, %144 : vector<8x32xf32>
    %148 = arith.addf %146, %147 : vector<8x32xf32>
    %149 = math.tanh %148 : vector<8x32xf32>
    %150 = arith.mulf %145, %149 : vector<8x32xf32>
    %151 = vector.extract_strided_slice %14 {offsets = [32, 0], sizes = [8, 128], strides = [1, 1]} : vector<64x128xf32> to vector<8x128xf32>
    %cst_38 = arith.constant dense<0.000000e+00> : vector<8x128xf32>
    %152 = tpu.matmul %130, %1, %cst_38 {dimension_numbers = #tpu.dot_dimension_numbers<[1], [0], [0], [1], [0, 0, 1, 1], [], []>} : vector<8x32xf32>, vector<32x128xf32>, vector<8x128xf32> -> vector<8x128xf32>
    %153 = arith.addf %151, %152 : vector<8x128xf32>
    %154 = arith.negf %153 : vector<8x128xf32>
    %155 = math.exp %154 : vector<8x128xf32>
    %cst_39 = arith.constant 1.000000e+00 : f32
    %156 = vector.broadcast %cst_39 : f32 to vector<8x128xf32>
    %157 = arith.addf %156, %155 : vector<8x128xf32>
    %158 = arith.divf %156, %157 : vector<8x128xf32>
    %159 = math.tanh %153 : vector<8x128xf32>
    %160 = vector.extract_strided_slice %158 {offsets = [0, 0], sizes = [8, 32], strides = [1, 1]} : vector<8x128xf32> to vector<8x32xf32>
    %161 = vector.extract_strided_slice %158 {offsets = [0, 32], sizes = [8, 32], strides = [1, 1]} : vector<8x128xf32> to vector<8x32xf32>
    %162 = vector.extract_strided_slice %159 {offsets = [0, 64], sizes = [8, 32], strides = [1, 1]} : vector<8x128xf32> to vector<8x32xf32>
    %163 = vector.extract_strided_slice %158 {offsets = [0, 96], sizes = [8, 32], strides = [1, 1]} : vector<8x128xf32> to vector<8x32xf32>
    %164 = arith.mulf %161, %128 : vector<8x32xf32>
    %165 = arith.mulf %160, %162 : vector<8x32xf32>
    %166 = arith.addf %164, %165 : vector<8x32xf32>
    %167 = math.tanh %166 : vector<8x32xf32>
    %168 = arith.mulf %163, %167 : vector<8x32xf32>
    %cst_40 = arith.constant dense<0.000000e+00> : vector<8x128xf32>
    %169 = tpu.matmul %130, %9, %cst_40 {dimension_numbers = #tpu.dot_dimension_numbers<[1], [0], [0], [1], [0, 0, 1, 1], [], []>} : vector<8x32xf32>, vector<32x128xf32>, vector<8x128xf32> -> vector<8x128xf32>
    %170 = vector.broadcast %7 : vector<1x128xf32> to vector<8x128xf32>
    %171 = arith.addf %169, %170 : vector<8x128xf32>
    %cst_41 = arith.constant dense<0.000000e+00> : vector<8x128xf32>
    %172 = tpu.matmul %150, %3, %cst_41 {dimension_numbers = #tpu.dot_dimension_numbers<[1], [0], [0], [1], [0, 0, 1, 1], [], []>} : vector<8x32xf32>, vector<32x128xf32>, vector<8x128xf32> -> vector<8x128xf32>
    %173 = arith.addf %171, %172 : vector<8x128xf32>
    %174 = arith.negf %173 : vector<8x128xf32>
    %175 = math.exp %174 : vector<8x128xf32>
    %cst_42 = arith.constant 1.000000e+00 : f32
    %176 = vector.broadcast %cst_42 : f32 to vector<8x128xf32>
    %177 = arith.addf %176, %175 : vector<8x128xf32>
    %178 = arith.divf %176, %177 : vector<8x128xf32>
    %179 = math.tanh %173 : vector<8x128xf32>
    %180 = vector.extract_strided_slice %178 {offsets = [0, 0], sizes = [8, 32], strides = [1, 1]} : vector<8x128xf32> to vector<8x32xf32>
    %181 = vector.extract_strided_slice %178 {offsets = [0, 32], sizes = [8, 32], strides = [1, 1]} : vector<8x128xf32> to vector<8x32xf32>
    %182 = vector.extract_strided_slice %179 {offsets = [0, 64], sizes = [8, 32], strides = [1, 1]} : vector<8x128xf32> to vector<8x32xf32>
    %183 = vector.extract_strided_slice %178 {offsets = [0, 96], sizes = [8, 32], strides = [1, 1]} : vector<8x128xf32> to vector<8x32xf32>
    %184 = arith.mulf %181, %148 : vector<8x32xf32>
    %185 = arith.mulf %180, %182 : vector<8x32xf32>
    %186 = arith.addf %184, %185 : vector<8x32xf32>
    %187 = math.tanh %186 : vector<8x32xf32>
    %188 = arith.mulf %183, %187 : vector<8x32xf32>
    %189 = vector.extract_strided_slice %14 {offsets = [40, 0], sizes = [8, 128], strides = [1, 1]} : vector<64x128xf32> to vector<8x128xf32>
    %cst_43 = arith.constant dense<0.000000e+00> : vector<8x128xf32>
    %190 = tpu.matmul %168, %1, %cst_43 {dimension_numbers = #tpu.dot_dimension_numbers<[1], [0], [0], [1], [0, 0, 1, 1], [], []>} : vector<8x32xf32>, vector<32x128xf32>, vector<8x128xf32> -> vector<8x128xf32>
    %191 = arith.addf %189, %190 : vector<8x128xf32>
    %192 = arith.negf %191 : vector<8x128xf32>
    %193 = math.exp %192 : vector<8x128xf32>
    %cst_44 = arith.constant 1.000000e+00 : f32
    %194 = vector.broadcast %cst_44 : f32 to vector<8x128xf32>
    %195 = arith.addf %194, %193 : vector<8x128xf32>
    %196 = arith.divf %194, %195 : vector<8x128xf32>
    %197 = math.tanh %191 : vector<8x128xf32>
    %198 = vector.extract_strided_slice %196 {offsets = [0, 0], sizes = [8, 32], strides = [1, 1]} : vector<8x128xf32> to vector<8x32xf32>
    %199 = vector.extract_strided_slice %196 {offsets = [0, 32], sizes = [8, 32], strides = [1, 1]} : vector<8x128xf32> to vector<8x32xf32>
    %200 = vector.extract_strided_slice %197 {offsets = [0, 64], sizes = [8, 32], strides = [1, 1]} : vector<8x128xf32> to vector<8x32xf32>
    %201 = vector.extract_strided_slice %196 {offsets = [0, 96], sizes = [8, 32], strides = [1, 1]} : vector<8x128xf32> to vector<8x32xf32>
    %202 = arith.mulf %199, %166 : vector<8x32xf32>
    %203 = arith.mulf %198, %200 : vector<8x32xf32>
    %204 = arith.addf %202, %203 : vector<8x32xf32>
    %205 = math.tanh %204 : vector<8x32xf32>
    %206 = arith.mulf %201, %205 : vector<8x32xf32>
    %cst_45 = arith.constant dense<0.000000e+00> : vector<8x128xf32>
    %207 = tpu.matmul %168, %9, %cst_45 {dimension_numbers = #tpu.dot_dimension_numbers<[1], [0], [0], [1], [0, 0, 1, 1], [], []>} : vector<8x32xf32>, vector<32x128xf32>, vector<8x128xf32> -> vector<8x128xf32>
    %208 = vector.broadcast %7 : vector<1x128xf32> to vector<8x128xf32>
    %209 = arith.addf %207, %208 : vector<8x128xf32>
    %cst_46 = arith.constant dense<0.000000e+00> : vector<8x128xf32>
    %210 = tpu.matmul %188, %3, %cst_46 {dimension_numbers = #tpu.dot_dimension_numbers<[1], [0], [0], [1], [0, 0, 1, 1], [], []>} : vector<8x32xf32>, vector<32x128xf32>, vector<8x128xf32> -> vector<8x128xf32>
    %211 = arith.addf %209, %210 : vector<8x128xf32>
    %212 = arith.negf %211 : vector<8x128xf32>
    %213 = math.exp %212 : vector<8x128xf32>
    %cst_47 = arith.constant 1.000000e+00 : f32
    %214 = vector.broadcast %cst_47 : f32 to vector<8x128xf32>
    %215 = arith.addf %214, %213 : vector<8x128xf32>
    %216 = arith.divf %214, %215 : vector<8x128xf32>
    %217 = math.tanh %211 : vector<8x128xf32>
    %218 = vector.extract_strided_slice %216 {offsets = [0, 0], sizes = [8, 32], strides = [1, 1]} : vector<8x128xf32> to vector<8x32xf32>
    %219 = vector.extract_strided_slice %216 {offsets = [0, 32], sizes = [8, 32], strides = [1, 1]} : vector<8x128xf32> to vector<8x32xf32>
    %220 = vector.extract_strided_slice %217 {offsets = [0, 64], sizes = [8, 32], strides = [1, 1]} : vector<8x128xf32> to vector<8x32xf32>
    %221 = vector.extract_strided_slice %216 {offsets = [0, 96], sizes = [8, 32], strides = [1, 1]} : vector<8x128xf32> to vector<8x32xf32>
    %222 = arith.mulf %219, %186 : vector<8x32xf32>
    %223 = arith.mulf %218, %220 : vector<8x32xf32>
    %224 = arith.addf %222, %223 : vector<8x32xf32>
    %225 = math.tanh %224 : vector<8x32xf32>
    %226 = arith.mulf %221, %225 : vector<8x32xf32>
    %227 = vector.extract_strided_slice %14 {offsets = [48, 0], sizes = [8, 128], strides = [1, 1]} : vector<64x128xf32> to vector<8x128xf32>
    %cst_48 = arith.constant dense<0.000000e+00> : vector<8x128xf32>
    %228 = tpu.matmul %206, %1, %cst_48 {dimension_numbers = #tpu.dot_dimension_numbers<[1], [0], [0], [1], [0, 0, 1, 1], [], []>} : vector<8x32xf32>, vector<32x128xf32>, vector<8x128xf32> -> vector<8x128xf32>
    %229 = arith.addf %227, %228 : vector<8x128xf32>
    %230 = arith.negf %229 : vector<8x128xf32>
    %231 = math.exp %230 : vector<8x128xf32>
    %cst_49 = arith.constant 1.000000e+00 : f32
    %232 = vector.broadcast %cst_49 : f32 to vector<8x128xf32>
    %233 = arith.addf %232, %231 : vector<8x128xf32>
    %234 = arith.divf %232, %233 : vector<8x128xf32>
    %235 = math.tanh %229 : vector<8x128xf32>
    %236 = vector.extract_strided_slice %234 {offsets = [0, 0], sizes = [8, 32], strides = [1, 1]} : vector<8x128xf32> to vector<8x32xf32>
    %237 = vector.extract_strided_slice %234 {offsets = [0, 32], sizes = [8, 32], strides = [1, 1]} : vector<8x128xf32> to vector<8x32xf32>
    %238 = vector.extract_strided_slice %235 {offsets = [0, 64], sizes = [8, 32], strides = [1, 1]} : vector<8x128xf32> to vector<8x32xf32>
    %239 = vector.extract_strided_slice %234 {offsets = [0, 96], sizes = [8, 32], strides = [1, 1]} : vector<8x128xf32> to vector<8x32xf32>
    %240 = arith.mulf %237, %204 : vector<8x32xf32>
    %241 = arith.mulf %236, %238 : vector<8x32xf32>
    %242 = arith.addf %240, %241 : vector<8x32xf32>
    %243 = math.tanh %242 : vector<8x32xf32>
    %244 = arith.mulf %239, %243 : vector<8x32xf32>
    %cst_50 = arith.constant dense<0.000000e+00> : vector<8x128xf32>
    %245 = tpu.matmul %206, %9, %cst_50 {dimension_numbers = #tpu.dot_dimension_numbers<[1], [0], [0], [1], [0, 0, 1, 1], [], []>} : vector<8x32xf32>, vector<32x128xf32>, vector<8x128xf32> -> vector<8x128xf32>
    %246 = vector.broadcast %7 : vector<1x128xf32> to vector<8x128xf32>
    %247 = arith.addf %245, %246 : vector<8x128xf32>
    %cst_51 = arith.constant dense<0.000000e+00> : vector<8x128xf32>
    %248 = tpu.matmul %226, %3, %cst_51 {dimension_numbers = #tpu.dot_dimension_numbers<[1], [0], [0], [1], [0, 0, 1, 1], [], []>} : vector<8x32xf32>, vector<32x128xf32>, vector<8x128xf32> -> vector<8x128xf32>
    %249 = arith.addf %247, %248 : vector<8x128xf32>
    %250 = arith.negf %249 : vector<8x128xf32>
    %251 = math.exp %250 : vector<8x128xf32>
    %cst_52 = arith.constant 1.000000e+00 : f32
    %252 = vector.broadcast %cst_52 : f32 to vector<8x128xf32>
    %253 = arith.addf %252, %251 : vector<8x128xf32>
    %254 = arith.divf %252, %253 : vector<8x128xf32>
    %255 = math.tanh %249 : vector<8x128xf32>
    %256 = vector.extract_strided_slice %254 {offsets = [0, 0], sizes = [8, 32], strides = [1, 1]} : vector<8x128xf32> to vector<8x32xf32>
    %257 = vector.extract_strided_slice %254 {offsets = [0, 32], sizes = [8, 32], strides = [1, 1]} : vector<8x128xf32> to vector<8x32xf32>
    %258 = vector.extract_strided_slice %255 {offsets = [0, 64], sizes = [8, 32], strides = [1, 1]} : vector<8x128xf32> to vector<8x32xf32>
    %259 = vector.extract_strided_slice %254 {offsets = [0, 96], sizes = [8, 32], strides = [1, 1]} : vector<8x128xf32> to vector<8x32xf32>
    %260 = arith.mulf %257, %224 : vector<8x32xf32>
    %261 = arith.mulf %256, %258 : vector<8x32xf32>
    %262 = arith.addf %260, %261 : vector<8x32xf32>
    %263 = math.tanh %262 : vector<8x32xf32>
    %264 = arith.mulf %259, %263 : vector<8x32xf32>
    %265 = vector.extract_strided_slice %14 {offsets = [56, 0], sizes = [8, 128], strides = [1, 1]} : vector<64x128xf32> to vector<8x128xf32>
    %cst_53 = arith.constant dense<0.000000e+00> : vector<8x128xf32>
    %266 = tpu.matmul %244, %1, %cst_53 {dimension_numbers = #tpu.dot_dimension_numbers<[1], [0], [0], [1], [0, 0, 1, 1], [], []>} : vector<8x32xf32>, vector<32x128xf32>, vector<8x128xf32> -> vector<8x128xf32>
    %267 = arith.addf %265, %266 : vector<8x128xf32>
    %268 = arith.negf %267 : vector<8x128xf32>
    %269 = math.exp %268 : vector<8x128xf32>
    %cst_54 = arith.constant 1.000000e+00 : f32
    %270 = vector.broadcast %cst_54 : f32 to vector<8x128xf32>
    %271 = arith.addf %270, %269 : vector<8x128xf32>
    %272 = arith.divf %270, %271 : vector<8x128xf32>
    %273 = math.tanh %267 : vector<8x128xf32>
    %274 = vector.extract_strided_slice %272 {offsets = [0, 0], sizes = [8, 32], strides = [1, 1]} : vector<8x128xf32> to vector<8x32xf32>
    %275 = vector.extract_strided_slice %272 {offsets = [0, 32], sizes = [8, 32], strides = [1, 1]} : vector<8x128xf32> to vector<8x32xf32>
    %276 = vector.extract_strided_slice %273 {offsets = [0, 64], sizes = [8, 32], strides = [1, 1]} : vector<8x128xf32> to vector<8x32xf32>
    %277 = vector.extract_strided_slice %272 {offsets = [0, 96], sizes = [8, 32], strides = [1, 1]} : vector<8x128xf32> to vector<8x32xf32>
    %278 = arith.mulf %275, %242 : vector<8x32xf32>
    %279 = arith.mulf %274, %276 : vector<8x32xf32>
    %280 = arith.addf %278, %279 : vector<8x32xf32>
    %281 = math.tanh %280 : vector<8x32xf32>
    %282 = arith.mulf %277, %281 : vector<8x32xf32>
    %cst_55 = arith.constant dense<0.000000e+00> : vector<8x128xf32>
    %283 = tpu.matmul %244, %9, %cst_55 {dimension_numbers = #tpu.dot_dimension_numbers<[1], [0], [0], [1], [0, 0, 1, 1], [], []>} : vector<8x32xf32>, vector<32x128xf32>, vector<8x128xf32> -> vector<8x128xf32>
    %284 = vector.broadcast %7 : vector<1x128xf32> to vector<8x128xf32>
    %285 = arith.addf %283, %284 : vector<8x128xf32>
    %cst_56 = arith.constant dense<0.000000e+00> : vector<8x128xf32>
    %286 = tpu.matmul %264, %3, %cst_56 {dimension_numbers = #tpu.dot_dimension_numbers<[1], [0], [0], [1], [0, 0, 1, 1], [], []>} : vector<8x32xf32>, vector<32x128xf32>, vector<8x128xf32> -> vector<8x128xf32>
    %287 = arith.addf %285, %286 : vector<8x128xf32>
    %288 = arith.negf %287 : vector<8x128xf32>
    %289 = math.exp %288 : vector<8x128xf32>
    %cst_57 = arith.constant 1.000000e+00 : f32
    %290 = vector.broadcast %cst_57 : f32 to vector<8x128xf32>
    %291 = arith.addf %290, %289 : vector<8x128xf32>
    %292 = arith.divf %290, %291 : vector<8x128xf32>
    %293 = math.tanh %287 : vector<8x128xf32>
    %294 = vector.extract_strided_slice %292 {offsets = [0, 0], sizes = [8, 32], strides = [1, 1]} : vector<8x128xf32> to vector<8x32xf32>
    %295 = vector.extract_strided_slice %292 {offsets = [0, 32], sizes = [8, 32], strides = [1, 1]} : vector<8x128xf32> to vector<8x32xf32>
    %296 = vector.extract_strided_slice %293 {offsets = [0, 64], sizes = [8, 32], strides = [1, 1]} : vector<8x128xf32> to vector<8x32xf32>
    %297 = vector.extract_strided_slice %292 {offsets = [0, 96], sizes = [8, 32], strides = [1, 1]} : vector<8x128xf32> to vector<8x32xf32>
    %298 = arith.mulf %295, %262 : vector<8x32xf32>
    %299 = arith.mulf %294, %296 : vector<8x32xf32>
    %300 = arith.addf %298, %299 : vector<8x32xf32>
    %301 = math.tanh %300 : vector<8x32xf32>
    %302 = arith.mulf %297, %301 : vector<8x32xf32>
    %cst_58 = arith.constant dense<0.000000e+00> : vector<8x128xf32>
    %303 = tpu.matmul %282, %9, %cst_58 {dimension_numbers = #tpu.dot_dimension_numbers<[1], [0], [0], [1], [0, 0, 1, 1], [], []>} : vector<8x32xf32>, vector<32x128xf32>, vector<8x128xf32> -> vector<8x128xf32>
    %304 = vector.broadcast %7 : vector<1x128xf32> to vector<8x128xf32>
    %305 = arith.addf %303, %304 : vector<8x128xf32>
    %cst_59 = arith.constant dense<0.000000e+00> : vector<8x128xf32>
    %306 = tpu.matmul %302, %3, %cst_59 {dimension_numbers = #tpu.dot_dimension_numbers<[1], [0], [0], [1], [0, 0, 1, 1], [], []>} : vector<8x32xf32>, vector<32x128xf32>, vector<8x128xf32> -> vector<8x128xf32>
    %307 = arith.addf %305, %306 : vector<8x128xf32>
    %308 = arith.negf %307 : vector<8x128xf32>
    %309 = math.exp %308 : vector<8x128xf32>
    %cst_60 = arith.constant 1.000000e+00 : f32
    %310 = vector.broadcast %cst_60 : f32 to vector<8x128xf32>
    %311 = arith.addf %310, %309 : vector<8x128xf32>
    %312 = arith.divf %310, %311 : vector<8x128xf32>
    %313 = math.tanh %307 : vector<8x128xf32>
    %314 = vector.extract_strided_slice %312 {offsets = [0, 0], sizes = [8, 32], strides = [1, 1]} : vector<8x128xf32> to vector<8x32xf32>
    %315 = vector.extract_strided_slice %312 {offsets = [0, 32], sizes = [8, 32], strides = [1, 1]} : vector<8x128xf32> to vector<8x32xf32>
    %316 = vector.extract_strided_slice %313 {offsets = [0, 64], sizes = [8, 32], strides = [1, 1]} : vector<8x128xf32> to vector<8x32xf32>
    %317 = vector.extract_strided_slice %312 {offsets = [0, 96], sizes = [8, 32], strides = [1, 1]} : vector<8x128xf32> to vector<8x32xf32>
    %318 = arith.mulf %315, %300 : vector<8x32xf32>
    %319 = arith.mulf %314, %316 : vector<8x32xf32>
    %320 = arith.addf %318, %319 : vector<8x32xf32>
    %321 = math.tanh %320 : vector<8x32xf32>
    %322 = arith.mulf %317, %321 : vector<8x32xf32>
    %c0_61 = arith.constant 0 : index
    %c0_62 = arith.constant 0 : index
    %323 = vector.load %arg5[%c0_61, %c0_62] : memref<32x3xf32, #tpu.memory_space<vmem>>, vector<32x3xf32>
    %cst_63 = arith.constant dense<0.000000e+00> : vector<8x3xf32>
    %324 = tpu.matmul %322, %323, %cst_63 {dimension_numbers = #tpu.dot_dimension_numbers<[1], [0], [0], [1], [0, 0, 1, 1], [], []>} : vector<8x32xf32>, vector<32x3xf32>, vector<8x3xf32> -> vector<8x3xf32>
    %c0_64 = arith.constant 0 : index
    %c0_65 = arith.constant 0 : index
    %325 = vector.load %arg6[%c0_64, %c0_65] : memref<1x3xf32, #tpu.memory_space<vmem>>, vector<1x3xf32>
    %326 = vector.broadcast %325 : vector<1x3xf32> to vector<8x3xf32>
    %327 = arith.addf %324, %326 : vector<8x3xf32>
    %c0_66 = arith.constant 0 : index
    %c0_67 = arith.constant 0 : index
    %328 = vector.load %arg7[%c0_66, %c0_67] : memref<8x3xf32, #tpu.memory_space<vmem>>, vector<8x3xf32>
    tpu.vector_store %arg7[%c0_66, %c0_67], %327 {strides = array<i32>} : memref<8x3xf32, #tpu.memory_space<vmem>>, vector<8x3xf32>,
    return
  }
}

</mosaic_0001>

<llo_original>
// kernel: lstm_model_forward.1
$region0: #{lstm_model_forward.1}
  #allocation0 [shape = 'u32[]', space=smem, size = 0x4, offset = 0x4, fixed_abs, tag = 'smem constant byte address 0x4 - core index']
  #allocation1 [shape = 'u32[144,128]{1,0:T(1,128)}', space=vmem, size = 0x12000, scoped, tag = 'internal scratch']
  %s0 = inlined_call_operand.vmem [shape: f32[64,4], index: 0, kind: input, shape index: {}]
  %s1 = inlined_call_operand.vmem [shape: f32[4,128], index: 1, kind: input, shape index: {}]
  %s2 = inlined_call_operand.vmem [shape: f32[1,32,128], index: 2, kind: input, shape index: {}]
  %s3 = inlined_call_operand.vmem [shape: f32[2,32,128], index: 3, kind: input, shape index: {}]
  %s4 = inlined_call_operand.vmem [shape: f32[2,1,128], index: 4, kind: input, shape index: {}]
  %s5 = inlined_call_operand.vmem [shape: f32[32,3], index: 5, kind: input, shape index: {}]
  %s6 = inlined_call_operand.vmem [shape: f32[1,3], index: 6, kind: input, shape index: {}]
  %s7 = inlined_call_operand.vmem [shape: f32[8,3], index: 7, kind: output, shape index: {}]
  %s8 = sld [smem:[#allocation0]]
  $region38: #{lstm_model_forward.1} parent=0
    _
  %s10 = ssub.s32 1, %s8
  %s11 = scalar_select 0, %s10, %s8
  // Predicated region
  $region2: #{lstm_model_forward.1} parent=0 // pred_check
    _
  $region3: #{lstm_model_forward.1} parent=0 // pred_check_branch
    %13 = sbr.rel (0) target = $region5
  $region4: #{lstm_model_forward.1} parent=0 // pred_region
    _
  $region5: #{lstm_model_forward.1} parent=0 // pred_fallthru
    _
  // Predicated region
  $region6: #{lstm_model_forward.1} parent=0 // pred_check
    _
  $region7: #{lstm_model_forward.1} parent=0 // pred_check_branch
    %15 = sbr.rel (0) target = $region9
  $region8: #{lstm_model_forward.1} parent=0 // pred_region
    _
  $region9: #{lstm_model_forward.1} parent=0 // pred_fallthru
    _
  // Predicated region
  $region10: #{lstm_model_forward.1} parent=0 // pred_check
    _
  $region11: #{lstm_model_forward.1} parent=0 // pred_check_branch
    %17 = sbr.rel (0) target = $region13
  $region12: #{lstm_model_forward.1} parent=0 // pred_region
    _
  $region13: #{lstm_model_forward.1} parent=0 // pred_fallthru
    _
  // Predicated region
  $region14: #{lstm_model_forward.1} parent=0 // pred_check
    _
  $region15: #{lstm_model_forward.1} parent=0 // pred_check_branch
    %19 = sbr.rel (0) target = $region17
  $region16: #{lstm_model_forward.1} parent=0 // pred_region
    _
  $region17: #{lstm_model_forward.1} parent=0 // pred_fallthru
    _
  // Predicated region
  $region18: #{lstm_model_forward.1} parent=0 // pred_check
    _
  $region19: #{lstm_model_forward.1} parent=0 // pred_check_branch
    %21 = sbr.rel (0) target = $region21
  $region20: #{lstm_model_forward.1} parent=0 // pred_region
    _
  $region21: #{lstm_model_forward.1} parent=0 // pred_fallthru
    _
  // Predicated region
  $region22: #{lstm_model_forward.1} parent=0 // pred_check
    _
  $region23: #{lstm_model_forward.1} parent=0 // pred_check_branch
    %23 = sbr.rel (0) target = $region25
  $region24: #{lstm_model_forward.1} parent=0 // pred_region
    _
  $region25: #{lstm_model_forward.1} parent=0 // pred_fallthru
    _
  // Predicated region
  $region26: #{lstm_model_forward.1} parent=0 // pred_check
    _
  $region27: #{lstm_model_forward.1} parent=0 // pred_check_branch
    %25 = sbr.rel (0) target = $region29
  $region28: #{lstm_model_forward.1} parent=0 // pred_region
    _
  $region29: #{lstm_model_forward.1} parent=0 // pred_fallthru
    _
  %v26 = vld [vmem:[%s3] sm:$0xff]
  %v27 = vld [vmem:[%s3 + $0x8] sm:$0xff]
  %v28 = vld [vmem:[%s3 + $0x10] sm:$0xff]
  %v29 = vld [vmem:[%s3 + $0x18] sm:$0xff]
  %s30 = scalar_lea.vmem %s3, 32
  %v31 = vld [vmem:[%s30] sm:$0xff]
  %v32 = vld [vmem:[%s30 + $0x8] sm:$0xff]
  %v33 = vld [vmem:[%s30 + $0x10] sm:$0xff]
  %v34 = vld [vmem:[%s30 + $0x18] sm:$0xff]
  %v35 = vld [vmem:[%s4] sm:$0x1]
  %s36 = scalar_lea.vmem %s4, 1
  %v37 = vld [vmem:[%s36] sm:$0x1]
  %v38 = vld [vmem:[%s2] sm:$0xff]
  %v39 = vld [vmem:[%s2 + $0x8] sm:$0xff]
  %v40 = vld [vmem:[%s2 + $0x10] sm:$0xff]
  %v41 = vld [vmem:[%s2 + $0x18] sm:$0xff]
  %v42 = vld [vmem:[%s0] sm:$0xff]
  %v43 = vld [vmem:[%s0 + $0x8] sm:$0xff]
  %v44 = vld [vmem:[%s0 + $0x10] sm:$0xff]
  %v45 = vld [vmem:[%s0 + $0x18] sm:$0xff]
  %v46 = vld [vmem:[%s0 + $0x20] sm:$0xff]
  %v47 = vld [vmem:[%s0 + $0x28] sm:$0xff]
  %v48 = vld [vmem:[%s0 + $0x30] sm:$0xff]
  %v49 = vld [vmem:[%s0 + $0x38] sm:$0xff]
  %v50 = vld [vmem:[%s1] sm:$0xf]
  %v52 = vlaneseq
  %v53 = vshrl.u32 %v52, 7
  %v54 = vsub.s32 0, %v53
  %v55 = vrot.slane %v35, %v54
  %vm57 = vcmask 31744
  %v59 = vsel %vm57, %v42, 0
  %v62 = vsel %vm57, %v43, 0
  %v65 = vsel %vm57, %v44, 0
  %v68 = vsel %vm57, %v45, 0
  %v71 = vsel %vm57, %v46, 0
  %v74 = vsel %vm57, %v47, 0
  %v77 = vsel %vm57, %v48, 0
  %v80 = vsel %vm57, %v49, 0
  %vm82 = vcmask 1043456
  %v84 = vsel %vm82, %v50, 0
  %86 = vmatprep.subr.mxu0 0.0
  %87 = vmatpush1.msra.mxu0 %v84
  %88 = vmatprep.subr.mxu0 0.0
  %89 = vmatpush1.msra.mxu0 0.0
  %90 = vmatprep.subr.mxu0 0.0
  %91 = vmatpush1.msra.mxu0 0.0
  %92 = vmatprep.subr.mxu0 0.0
  %93 = vmatpush1.msra.mxu0 0.0
  %94 = vmatprep.subr.mxu0 0.0
  %95 = vmatpush1.msra.mxu0 0.0
  %96 = vmatprep.subr.mxu0 0.0
  %97 = vmatpush1.msra.mxu0 0.0
  %98 = vmatprep.subr.mxu0 0.0
  %99 = vmatpush1.msra.mxu0 0.0
  %100 = vmatprep.subr.mxu0 0.0
  %101 = vmatpush1.msra.mxu0 0.0
  %102 = vmatprep.subr.mxu0 0.0
  %103 = vmatpush1.msra.mxu0 0.0
  %104 = vmatprep.subr.mxu0 0.0
  %105 = vmatpush1.msra.mxu0 0.0
  %106 = vmatprep.subr.mxu0 0.0
  %107 = vmatpush1.msra.mxu0 0.0
  %108 = vmatprep.subr.mxu0 0.0
  %109 = vmatpush1.msra.mxu0 0.0
  %110 = vmatprep.subr.mxu0 0.0
  %111 = vmatpush1.msra.mxu0 0.0
  %112 = vmatprep.subr.mxu0 0.0
  %113 = vmatpush1.msra.mxu0 0.0
  %114 = vmatprep.subr.mxu0 0.0
  %115 = vmatpush1.msra.mxu0 0.0
  %116 = vmatprep.subr.mxu0 0.0
  %117 = vmatpush1.msra.mxu0 0.0
  %118 = vmatprep.subr.mxu0 0.0
  %119 = vmatpush1.msra.mxu0 0.0
  %120 = vmatprep.subr.mxu0 0.0
  %121 = vmatpush1.msra.mxu0 0.0
  %122 = vmatprep.subr.mxu0 0.0
  %123 = vmatpush1.msra.mxu0 0.0
  %124 = vmatprep.subr.mxu0 0.0
  %125 = vmatpush1.msra.mxu0 0.0
  %126 = vmatprep.subr.mxu0 0.0
  %127 = vmatpush1.msra.mxu0 0.0
  %128 = vmatprep.subr.mxu0 0.0
  %129 = vmatpush1.msra.mxu0 0.0
  %130 = vmatprep.subr.mxu0 0.0
  %131 = vmatpush1.msra.mxu0 0.0
  %132 = vmatprep.subr.mxu0 0.0
  %133 = vmatpush1.msra.mxu0 0.0
  %134 = vmatprep.subr.mxu0 0.0
  %135 = vmatpush1.msra.mxu0 0.0
  %136 = vmatprep.subr.mxu0 0.0
  %137 = vmatpush1.msra.mxu0 0.0
  %138 = vmatprep.subr.mxu0 0.0
  %139 = vmatpush1.msra.mxu0 0.0
  %140 = vmatprep.subr.mxu0 0.0
  %141 = vmatpush1.msra.mxu0 0.0
  %142 = vmatprep.subr.mxu0 0.0
  %143 = vmatpush1.msra.mxu0 0.0
  %144 = vmatprep.subr.mxu0 0.0
  %145 = vmatpush1.msra.mxu0 0.0
  %146 = vmatprep.subr.mxu0 0.0
  %147 = vmatpush1.msra.mxu0 0.0
  %148 = vmatprep.subr.mxu0 0.0
  %149 = vmatpush1.msra.mxu0 0.0
  %150 = vmatprep.mubr.f32.mxu0 0.0
  %151 = vmatmul.mubr.f32.gmra.mrb[0].mxu0 %v59
  %v152 = vpop.f32.mrb[0].mxu0
  %v153 = vadd.f32 %v55, %v152
  %v154 = vpop.f32.mrb[0].mxu0
  %155 = vmatprep.mubr.f32.mxu0 0.0
  %156 = vmatmul.mubr.f32.gmra.mrb[0].mxu0 %v62
  %v157 = vpop.f32.mrb[0].mxu0
  %v158 = vadd.f32 %v55, %v157
  %v159 = vpop.f32.mrb[0].mxu0
  %160 = vmatprep.mubr.f32.mxu0 0.0
  %161 = vmatmul.mubr.f32.gmra.mrb[0].mxu0 %v65
  %v162 = vpop.f32.mrb[0].mxu0
  %v163 = vadd.f32 %v55, %v162
  %v164 = vpop.f32.mrb[0].mxu0
  %165 = vmatprep.mubr.f32.mxu0 0.0
  %166 = vmatmul.mubr.f32.gmra.mrb[0].mxu0 %v68
  %v167 = vpop.f32.mrb[0].mxu0
  %v168 = vadd.f32 %v55, %v167
  %v169 = vpop.f32.mrb[0].mxu0
  %170 = vmatprep.mubr.f32.mxu0 0.0
  %171 = vmatmul.mubr.f32.gmra.mrb[0].mxu0 %v71
  %v172 = vpop.f32.mrb[0].mxu0
  %v173 = vadd.f32 %v55, %v172
  %v174 = vpop.f32.mrb[0].mxu0
  %175 = vmatprep.mubr.f32.mxu0 0.0
  %176 = vmatmul.mubr.f32.gmra.mrb[0].mxu0 %v74
  %v177 = vpop.f32.mrb[0].mxu0
  %v178 = vadd.f32 %v55, %v177
  %v179 = vpop.f32.mrb[0].mxu0
  %180 = vmatprep.mubr.f32.mxu0 0.0
  %181 = vmatmul.mubr.f32.gmra.mrb[0].mxu0 %v77
  %v182 = vpop.f32.mrb[0].mxu0
  %v183 = vadd.f32 %v55, %v182
  %v184 = vpop.f32.mrb[0].mxu0
  %185 = vmatprep.mubr.f32.mxu0 0.0
  %186 = vmatmul.mubr.f32.gmra.mrb[0].mxu0 %v80
  %v187 = vpop.f32.mrb[0].mxu0
  %v188 = vadd.f32 %v55, %v187
  %v189 = vpop.f32.mrb[0].mxu0
  %190 = vdwg.mxu0
  %vm191 = vcmask 261120
  %v193 = vsel %vm191, 0.0, 0
  %195 = vmatprep.subr.mxu0 0.0
  %196 = vmatpush1.msra.mxu0 %v26
  %197 = vmatprep.subr.mxu0 0.0
  %198 = vmatpush1.msra.mxu0 %v27
  %199 = vmatprep.subr.mxu0 0.0
  %200 = vmatpush1.msra.mxu0 %v28
  %201 = vmatprep.subr.mxu0 0.0
  %202 = vmatpush1.msra.mxu0 %v29
  %203 = vmatprep.subr.mxu0 0.0
  %204 = vmatpush1.msra.mxu0 0.0
  %205 = vmatprep.subr.mxu0 0.0
  %206 = vmatpush1.msra.mxu0 0.0
  %207 = vmatprep.subr.mxu0 0.0
  %208 = vmatpush1.msra.mxu0 0.0
  %209 = vmatprep.subr.mxu0 0.0
  %210 = vmatpush1.msra.mxu0 0.0
  %211 = vmatprep.subr.mxu0 0.0
  %212 = vmatpush1.msra.mxu0 0.0
  %213 = vmatprep.subr.mxu0 0.0
  %214 = vmatpush1.msra.mxu0 0.0
  %215 = vmatprep.subr.mxu0 0.0
  %216 = vmatpush1.msra.mxu0 0.0
  %217 = vmatprep.subr.mxu0 0.0
  %218 = vmatpush1.msra.mxu0 0.0
  %219 = vmatprep.subr.mxu0 0.0
  %220 = vmatpush1.msra.mxu0 0.0
  %221 = vmatprep.subr.mxu0 0.0
  %222 = vmatpush1.msra.mxu0 0.0
  %223 = vmatprep.subr.mxu0 0.0
  %224 = vmatpush1.msra.mxu0 0.0
  %225 = vmatprep.subr.mxu0 0.0
  %226 = vmatpush1.msra.mxu0 0.0
  %227 = vmatprep.subr.mxu0 0.0
  %228 = vmatpush1.msra.mxu0 0.0
  %229 = vmatprep.subr.mxu0 0.0
  %230 = vmatpush1.msra.mxu0 0.0
  %231 = vmatprep.subr.mxu0 0.0
  %232 = vmatpush1.msra.mxu0 0.0
  %233 = vmatprep.subr.mxu0 0.0
  %234 = vmatpush1.msra.mxu0 0.0
  %235 = vmatprep.subr.mxu0 0.0
  %236 = vmatpush1.msra.mxu0 0.0
  %237 = vmatprep.subr.mxu0 0.0
  %238 = vmatpush1.msra.mxu0 0.0
  %239 = vmatprep.subr.mxu0 0.0
  %240 = vmatpush1.msra.mxu0 0.0
  %241 = vmatprep.subr.mxu0 0.0
  %242 = vmatpush1.msra.mxu0 0.0
  %243 = vmatprep.subr.mxu0 0.0
  %244 = vmatpush1.msra.mxu0 0.0
  %245 = vmatprep.subr.mxu0 0.0
  %246 = vmatpush1.msra.mxu0 0.0
  %247 = vmatprep.subr.mxu0 0.0
  %248 = vmatpush1.msra.mxu0 0.0
  %249 = vmatprep.subr.mxu0 0.0
  %250 = vmatpush1.msra.mxu0 0.0
  %251 = vmatprep.subr.mxu0 0.0
  %252 = vmatpush1.msra.mxu0 0.0
  %253 = vmatprep.subr.mxu0 0.0
  %254 = vmatpush1.msra.mxu0 0.0
  %255 = vmatprep.subr.mxu0 0.0
  %256 = vmatpush1.msra.mxu0 0.0
  %257 = vmatprep.subr.mxu0 0.0
  %258 = vmatpush1.msra.mxu0 0.0
  %259 = vmatprep.mubr.f32.mxu0 0.0
  %260 = vmatmul.mubr.f32.gmra.mrb[0].mxu0 %v193
  %v261 = vpop.f32.mrb[0].mxu0
  %v262 = vadd.f32 0.0, %v261
  %v263 = vpop.f32.mrb[0].mxu0
  %264 = vdwg.mxu0
  %v265 = vadd.f32 %v153, %v262
  %v266 = vxor.u32 %v265, 2147483648
  %v267 = vmul.f32 %v266, 1.442695
  %v268 = vpow.pop %v267
  %v269 = vadd.f32 %v268, 1.0
  %v270 = vrcp.pop %v269
  %v271 = vmul.f32 1.0, %v270
  %v272 = vtanh.pop %v265
  %v273 = vmul.f32 %v271, 0.0
  %275 = vrot.lane.b32.xlu0 %v272, 64
  %v276 = vpop.permute.xlu0 %275
  %v278 = vmul.f32 %v271, %v276
  %280 = vrot.lane.b32.xlu0 %v278, 32
  %v281 = vpop.permute.xlu0 %280
  %v283 = vadd.f32 %v273, %v281
  %v284 = vtanh.pop %v283
  %286 = vrot.lane.b32.xlu0 %v284, 64
  %v287 = vpop.permute.xlu0 %286
  %v289 = vmul.f32 %v271, %v287
  %291 = vrot.lane.b32.xlu0 %v289, 32
  %v292 = vpop.permute.xlu0 %291
  %v293 = vsel %vm191, %v292, 0
  %295 = vmatprep.subr.mxu0 0.0
  %296 = vmatpush1.msra.mxu0 %v26
  %297 = vmatprep.subr.mxu0 0.0
  %298 = vmatpush1.msra.mxu0 %v27
  %299 = vmatprep.subr.mxu0 0.0
  %300 = vmatpush1.msra.mxu0 %v28
  %301 = vmatprep.subr.mxu0 0.0
  %302 = vmatpush1.msra.mxu0 %v29
  %303 = vmatprep.subr.mxu0 0.0
  %304 = vmatpush1.msra.mxu0 0.0
  %305 = vmatprep.subr.mxu0 0.0
  %306 = vmatpush1.msra.mxu0 0.0
  %307 = vmatprep.subr.mxu0 0.0
  %308 = vmatpush1.msra.mxu0 0.0
  %309 = vmatprep.subr.mxu0 0.0
  %310 = vmatpush1.msra.mxu0 0.0
  %311 = vmatprep.subr.mxu0 0.0
  %312 = vmatpush1.msra.mxu0 0.0
  %313 = vmatprep.subr.mxu0 0.0
  %314 = vmatpush1.msra.mxu0 0.0
  %315 = vmatprep.subr.mxu0 0.0
  %316 = vmatpush1.msra.mxu0 0.0
  %317 = vmatprep.subr.mxu0 0.0
  %318 = vmatpush1.msra.mxu0 0.0
  %319 = vmatprep.subr.mxu0 0.0
  %320 = vmatpush1.msra.mxu0 0.0
  %321 = vmatprep.subr.mxu0 0.0
  %322 = vmatpush1.msra.mxu0 0.0
  %323 = vmatprep.subr.mxu0 0.0
  %324 = vmatpush1.msra.mxu0 0.0
  %325 = vmatprep.subr.mxu0 0.0
  %326 = vmatpush1.msra.mxu0 0.0
  %327 = vmatprep.subr.mxu0 0.0
  %328 = vmatpush1.msra.mxu0 0.0
  %329 = vmatprep.subr.mxu0 0.0
  %330 = vmatpush1.msra.mxu0 0.0
  %331 = vmatprep.subr.mxu0 0.0
  %332 = vmatpush1.msra.mxu0 0.0
  %333 = vmatprep.subr.mxu0 0.0
  %334 = vmatpush1.msra.mxu0 0.0
  %335 = vmatprep.subr.mxu0 0.0
  %336 = vmatpush1.msra.mxu0 0.0
  %337 = vmatprep.subr.mxu0 0.0
  %338 = vmatpush1.msra.mxu0 0.0
  %339 = vmatprep.subr.mxu0 0.0
  %340 = vmatpush1.msra.mxu0 0.0
  %341 = vmatprep.subr.mxu0 0.0
  %342 = vmatpush1.msra.mxu0 0.0
  %343 = vmatprep.subr.mxu0 0.0
  %344 = vmatpush1.msra.mxu0 0.0
  %345 = vmatprep.subr.mxu0 0.0
  %346 = vmatpush1.msra.mxu0 0.0
  %347 = vmatprep.subr.mxu0 0.0
  %348 = vmatpush1.msra.mxu0 0.0
  %349 = vmatprep.subr.mxu0 0.0
  %350 = vmatpush1.msra.mxu0 0.0
  %351 = vmatprep.subr.mxu0 0.0
  %352 = vmatpush1.msra.mxu0 0.0
  %353 = vmatprep.subr.mxu0 0.0
  %354 = vmatpush1.msra.mxu0 0.0
  %355 = vmatprep.subr.mxu0 0.0
  %356 = vmatpush1.msra.mxu0 0.0
  %357 = vmatprep.subr.mxu0 0.0
  %358 = vmatpush1.msra.mxu0 0.0
  %359 = vmatprep.mubr.f32.mxu0 0.0
  %360 = vmatmul.mubr.f32.gmra.mrb[0].mxu0 %v293
  %v361 = vpop.f32.mrb[0].mxu0
  %v362 = vadd.f32 0.0, %v361
  %v363 = vpop.f32.mrb[0].mxu0
  %364 = vdwg.mxu0
  %v365 = vadd.f32 %v158, %v362
  %v366 = vxor.u32 %v365, 2147483648
  %v367 = vmul.f32 %v366, 1.442695
  %v368 = vpow.pop %v367
  %v369 = vadd.f32 %v368, 1.0
  %v370 = vrcp.pop %v369
  %v371 = vmul.f32 1.0, %v370
  %v372 = vtanh.pop %v365
  %v373 = vmul.f32 %v371, %v283
  %375 = vrot.lane.b32.xlu0 %v372, 64
  %v376 = vpop.permute.xlu0 %375
  %v378 = vmul.f32 %v371, %v376
  %380 = vrot.lane.b32.xlu0 %v378, 32
  %v381 = vpop.permute.xlu0 %380
  %v383 = vadd.f32 %v373, %v381
  %v384 = vtanh.pop %v383
  %386 = vrot.lane.b32.xlu0 %v384, 64
  %v387 = vpop.permute.xlu0 %386
  %v389 = vmul.f32 %v371, %v387
  %v391 = vlaneseq
  %v392 = vshrl.u32 %v391, 7
  %v393 = vsub.s32 0, %v392
  %v394 = vrot.slane %v37, %v393
  %396 = vmatprep.subr.mxu0 0.0
  %397 = vmatpush1.msra.mxu0 %v38
  %398 = vmatprep.subr.mxu0 0.0
  %399 = vmatpush1.msra.mxu0 %v39
  %400 = vmatprep.subr.mxu0 0.0
  %401 = vmatpush1.msra.mxu0 %v40
  %402 = vmatprep.subr.mxu0 0.0
  %403 = vmatpush1.msra.mxu0 %v41
  %404 = vmatprep.subr.mxu0 0.0
  %405 = vmatpush1.msra.mxu0 0.0
  %406 = vmatprep.subr.mxu0 0.0
  %407 = vmatpush1.msra.mxu0 0.0
  %408 = vmatprep.subr.mxu0 0.0
  %409 = vmatpush1.msra.mxu0 0.0
  %410 = vmatprep.subr.mxu0 0.0
  %411 = vmatpush1.msra.mxu0 0.0
  %412 = vmatprep.subr.mxu0 0.0
  %413 = vmatpush1.msra.mxu0 0.0
  %414 = vmatprep.subr.mxu0 0.0
  %415 = vmatpush1.msra.mxu0 0.0
  %416 = vmatprep.subr.mxu0 0.0
  %417 = vmatpush1.msra.mxu0 0.0
  %418 = vmatprep.subr.mxu0 0.0
  %419 = vmatpush1.msra.mxu0 0.0
  %420 = vmatprep.subr.mxu0 0.0
  %421 = vmatpush1.msra.mxu0 0.0
  %422 = vmatprep.subr.mxu0 0.0
  %423 = vmatpush1.msra.mxu0 0.0
  %424 = vmatprep.subr.mxu0 0.0
  %425 = vmatpush1.msra.mxu0 0.0
  %426 = vmatprep.subr.mxu0 0.0
  %427 = vmatpush1.msra.mxu0 0.0
  %428 = vmatprep.subr.mxu0 0.0
  %429 = vmatpush1.msra.mxu0 0.0
  %430 = vmatprep.subr.mxu0 0.0
  %431 = vmatpush1.msra.mxu0 0.0
  %432 = vmatprep.subr.mxu0 0.0
  %433 = vmatpush1.msra.mxu0 0.0
  %434 = vmatprep.subr.mxu0 0.0
  %435 = vmatpush1.msra.mxu0 0.0
  %436 = vmatprep.subr.mxu0 0.0
  %437 = vmatpush1.msra.mxu0 0.0
  %438 = vmatprep.subr.mxu0 0.0
  %439 = vmatpush1.msra.mxu0 0.0
  %440 = vmatprep.subr.mxu0 0.0
  %441 = vmatpush1.msra.mxu0 0.0
  %442 = vmatprep.subr.mxu0 0.0
  %443 = vmatpush1.msra.mxu0 0.0
  %444 = vmatprep.subr.mxu0 0.0
  %445 = vmatpush1.msra.mxu0 0.0
  %446 = vmatprep.subr.mxu0 0.0
  %447 = vmatpush1.msra.mxu0 0.0
  %448 = vmatprep.subr.mxu0 0.0
  %449 = vmatpush1.msra.mxu0 0.0
  %450 = vmatprep.subr.mxu0 0.0
  %451 = vmatpush1.msra.mxu0 0.0
  %452 = vmatprep.subr.mxu0 0.0
  %453 = vmatpush1.msra.mxu0 0.0
  %454 = vmatprep.subr.mxu0 0.0
  %455 = vmatpush1.msra.mxu0 0.0
  %456 = vmatprep.subr.mxu0 0.0
  %457 = vmatpush1.msra.mxu0 0.0
  %458 = vmatprep.subr.mxu0 0.0
  %459 = vmatpush1.msra.mxu0 0.0
  %460 = vmatprep.mubr.f32.mxu0 0.0
  %461 = vmatmul.mubr.f32.gmra.mrb[0].mxu0 %v293
  %v462 = vpop.f32.mrb[0].mxu0
  %v463 = vadd.f32 %v394, %v462
  %v464 = vpop.f32.mrb[0].mxu0
  %465 = vdwg.mxu0
  %466 = vmatprep.subr.mxu0 0.0
  %467 = vmatpush1.msra.mxu0 %v31
  %468 = vmatprep.subr.mxu0 0.0
  %469 = vmatpush1.msra.mxu0 %v32
  %470 = vmatprep.subr.mxu0 0.0
  %471 = vmatpush1.msra.mxu0 %v33
  %472 = vmatprep.subr.mxu0 0.0
  %473 = vmatpush1.msra.mxu0 %v34
  %474 = vmatprep.subr.mxu0 0.0
  %475 = vmatpush1.msra.mxu0 0.0
  %476 = vmatprep.subr.mxu0 0.0
  %477 = vmatpush1.msra.mxu0 0.0
  %478 = vmatprep.subr.mxu0 0.0
  %479 = vmatpush1.msra.mxu0 0.0
  %480 = vmatprep.subr.mxu0 0.0
  %481 = vmatpush1.msra.mxu0 0.0
  %482 = vmatprep.subr.mxu0 0.0
  %483 = vmatpush1.msra.mxu0 0.0
  %484 = vmatprep.subr.mxu0 0.0
  %485 = vmatpush1.msra.mxu0 0.0
  %486 = vmatprep.subr.mxu0 0.0
  %487 = vmatpush1.msra.mxu0 0.0
  %488 = vmatprep.subr.mxu0 0.0
  %489 = vmatpush1.msra.mxu0 0.0
  %490 = vmatprep.subr.mxu0 0.0
  %491 = vmatpush1.msra.mxu0 0.0
  %492 = vmatprep.subr.mxu0 0.0
  %493 = vmatpush1.msra.mxu0 0.0
  %494 = vmatprep.subr.mxu0 0.0
  %495 = vmatpush1.msra.mxu0 0.0
  %496 = vmatprep.subr.mxu0 0.0
  %497 = vmatpush1.msra.mxu0 0.0
  %498 = vmatprep.subr.mxu0 0.0
  %499 = vmatpush1.msra.mxu0 0.0
  %500 = vmatprep.subr.mxu0 0.0
  %501 = vmatpush1.msra.mxu0 0.0
  %502 = vmatprep.subr.mxu0 0.0
  %503 = vmatpush1.msra.mxu0 0.0
  %504 = vmatprep.subr.mxu0 0.0
  %505 = vmatpush1.msra.mxu0 0.0
  %506 = vmatprep.subr.mxu0 0.0
  %507 = vmatpush1.msra.mxu0 0.0
  %508 = vmatprep.subr.mxu0 0.0
  %509 = vmatpush1.msra.mxu0 0.0
  %510 = vmatprep.subr.mxu0 0.0
  %511 = vmatpush1.msra.mxu0 0.0
  %512 = vmatprep.subr.mxu0 0.0
  %513 = vmatpush1.msra.mxu0 0.0
  %514 = vmatprep.subr.mxu0 0.0
  %515 = vmatpush1.msra.mxu0 0.0
  %516 = vmatprep.subr.mxu0 0.0
  %517 = vmatpush1.msra.mxu0 0.0
  %518 = vmatprep.subr.mxu0 0.0
  %519 = vmatpush1.msra.mxu0 0.0
  %520 = vmatprep.subr.mxu0 0.0
  %521 = vmatpush1.msra.mxu0 0.0
  %522 = vmatprep.subr.mxu0 0.0
  %523 = vmatpush1.msra.mxu0 0.0
  %524 = vmatprep.subr.mxu0 0.0
  %525 = vmatpush1.msra.mxu0 0.0
  %526 = vmatprep.subr.mxu0 0.0
  %527 = vmatpush1.msra.mxu0 0.0
  %528 = vmatprep.subr.mxu0 0.0
  %529 = vmatpush1.msra.mxu0 0.0
  %530 = vmatprep.mubr.f32.mxu0 0.0
  %531 = vmatmul.mubr.f32.gmra.mrb[0].mxu0 %v193
  %v532 = vpop.f32.mrb[0].mxu0
  %v533 = vadd.f32 0.0, %v532
  %v534 = vpop.f32.mrb[0].mxu0
  %535 = vdwg.mxu0
  %v536 = vadd.f32 %v463, %v533
  %v537 = vxor.u32 %v536, 2147483648
  %v538 = vmul.f32 %v537, 1.442695
  %v539 = vpow.pop %v538
  %v540 = vadd.f32 %v539, 1.0
  %v541 = vrcp.pop %v540
  %v542 = vmul.f32 1.0, %v541
  %v543 = vtanh.pop %v536
  %v544 = vmul.f32 %v542, 0.0
  %546 = vrot.lane.b32.xlu0 %v543, 64
  %v547 = vpop.permute.xlu0 %546
  %v549 = vmul.f32 %v542, %v547
  %551 = vrot.lane.b32.xlu0 %v549, 32
  %v552 = vpop.permute.xlu0 %551
  %v554 = vadd.f32 %v544, %v552
  %v555 = vtanh.pop %v554
  %557 = vrot.lane.b32.xlu0 %v555, 64
  %v558 = vpop.permute.xlu0 %557
  %v560 = vmul.f32 %v542, %v558
  %562 = vrot.lane.b32.xlu0 %v389, 32
  %v563 = vpop.permute.xlu0 %562
  %v564 = vsel %vm191, %v563, 0
  %566 = vmatprep.subr.mxu0 0.0
  %567 = vmatpush1.msra.mxu0 %v26
  %568 = vmatprep.subr.mxu0 0.0
  %569 = vmatpush1.msra.mxu0 %v27
  %570 = vmatprep.subr.mxu0 0.0
  %571 = vmatpush1.msra.mxu0 %v28
  %572 = vmatprep.subr.mxu0 0.0
  %573 = vmatpush1.msra.mxu0 %v29
  %574 = vmatprep.subr.mxu0 0.0
  %575 = vmatpush1.msra.mxu0 0.0
  %576 = vmatprep.subr.mxu0 0.0
  %577 = vmatpush1.msra.mxu0 0.0
  %578 = vmatprep.subr.mxu0 0.0
  %579 = vmatpush1.msra.mxu0 0.0
  %580 = vmatprep.subr.mxu0 0.0
  %581 = vmatpush1.msra.mxu0 0.0
  %582 = vmatprep.subr.mxu0 0.0
  %583 = vmatpush1.msra.mxu0 0.0
  %584 = vmatprep.subr.mxu0 0.0
  %585 = vmatpush1.msra.mxu0 0.0
  %586 = vmatprep.subr.mxu0 0.0
  %587 = vmatpush1.msra.mxu0 0.0
  %588 = vmatprep.subr.mxu0 0.0
  %589 = vmatpush1.msra.mxu0 0.0
  %590 = vmatprep.subr.mxu0 0.0
  %591 = vmatpush1.msra.mxu0 0.0
  %592 = vmatprep.subr.mxu0 0.0
  %593 = vmatpush1.msra.mxu0 0.0
  %594 = vmatprep.subr.mxu0 0.0
  %595 = vmatpush1.msra.mxu0 0.0
  %596 = vmatprep.subr.mxu0 0.0
  %597 = vmatpush1.msra.mxu0 0.0
  %598 = vmatprep.subr.mxu0 0.0
  %599 = vmatpush1.msra.mxu0 0.0
  %600 = vmatprep.subr.mxu0 0.0
  %601 = vmatpush1.msra.mxu0 0.0
  %602 = vmatprep.subr.mxu0 0.0
  %603 = vmatpush1.msra.mxu0 0.0
  %604 = vmatprep.subr.mxu0 0.0
  %605 = vmatpush1.msra.mxu0 0.0
  %606 = vmatprep.subr.mxu0 0.0
  %607 = vmatpush1.msra.mxu0 0.0
  %608 = vmatprep.subr.mxu0 0.0
  %609 = vmatpush1.msra.mxu0 0.0
  %610 = vmatprep.subr.mxu0 0.0
  %611 = vmatpush1.msra.mxu0 0.0
  %612 = vmatprep.subr.mxu0 0.0
  %613 = vmatpush1.msra.mxu0 0.0
  %614 = vmatprep.subr.mxu0 0.0
  %615 = vmatpush1.msra.mxu0 0.0
  %616 = vmatprep.subr.mxu0 0.0
  %617 = vmatpush1.msra.mxu0 0.0
  %618 = vmatprep.subr.mxu0 0.0
  %619 = vmatpush1.msra.mxu0 0.0
  %620 = vmatprep.subr.mxu0 0.0
  %621 = vmatpush1.msra.mxu0 0.0
  %622 = vmatprep.subr.mxu0 0.0
  %623 = vmatpush1.msra.mxu0 0.0
  %624 = vmatprep.subr.mxu0 0.0
  %625 = vmatpush1.msra.mxu0 0.0
  %626 = vmatprep.subr.mxu0 0.0
  %627 = vmatpush1.msra.mxu0 0.0
  %628 = vmatprep.subr.mxu0 0.0
  %629 = vmatpush1.msra.mxu0 0.0
  %630 = vmatprep.mubr.f32.mxu0 0.0
  %631 = vmatmul.mubr.f32.gmra.mrb[0].mxu0 %v564
  %v632 = vpop.f32.mrb[0].mxu0
  %v633 = vadd.f32 0.0, %v632
  %v634 = vpop.f32.mrb[0].mxu0
  %635 = vdwg.mxu0
  %v636 = vadd.f32 %v163, %v633
  %v637 = vxor.u32 %v636, 2147483648
  %v638 = vmul.f32 %v637, 1.442695
  %v639 = vpow.pop %v638
  %v640 = vadd.f32 %v639, 1.0
  %v641 = vrcp.pop %v640
  %v642 = vmul.f32 1.0, %v641
  %v643 = vtanh.pop %v636
  %v644 = vmul.f32 %v642, %v383
  %646 = vrot.lane.b32.xlu0 %v643, 64
  %v647 = vpop.permute.xlu0 %646
  %v649 = vmul.f32 %v642, %v647
  %651 = vrot.lane.b32.xlu0 %v649, 32
  %v652 = vpop.permute.xlu0 %651
  %v654 = vadd.f32 %v644, %v652
  %v655 = vtanh.pop %v654
  %657 = vrot.lane.b32.xlu0 %v655, 64
  %v658 = vpop.permute.xlu0 %657
  %v660 = vmul.f32 %v642, %v658
  %661 = vmatprep.subr.mxu0 0.0
  %662 = vmatpush1.msra.mxu0 %v38
  %663 = vmatprep.subr.mxu0 0.0
  %664 = vmatpush1.msra.mxu0 %v39
  %665 = vmatprep.subr.mxu0 0.0
  %666 = vmatpush1.msra.mxu0 %v40
  %667 = vmatprep.subr.mxu0 0.0
  %668 = vmatpush1.msra.mxu0 %v41
  %669 = vmatprep.subr.mxu0 0.0
  %670 = vmatpush1.msra.mxu0 0.0
  %671 = vmatprep.subr.mxu0 0.0
  %672 = vmatpush1.msra.mxu0 0.0
  %673 = vmatprep.subr.mxu0 0.0
  %674 = vmatpush1.msra.mxu0 0.0
  %675 = vmatprep.subr.mxu0 0.0
  %676 = vmatpush1.msra.mxu0 0.0
  %677 = vmatprep.subr.mxu0 0.0
  %678 = vmatpush1.msra.mxu0 0.0
  %679 = vmatprep.subr.mxu0 0.0
  %680 = vmatpush1.msra.mxu0 0.0
  %681 = vmatprep.subr.mxu0 0.0
  %682 = vmatpush1.msra.mxu0 0.0
  %683 = vmatprep.subr.mxu0 0.0
  %684 = vmatpush1.msra.mxu0 0.0
  %685 = vmatprep.subr.mxu0 0.0
  %686 = vmatpush1.msra.mxu0 0.0
  %687 = vmatprep.subr.mxu0 0.0
  %688 = vmatpush1.msra.mxu0 0.0
  %689 = vmatprep.subr.mxu0 0.0
  %690 = vmatpush1.msra.mxu0 0.0
  %691 = vmatprep.subr.mxu0 0.0
  %692 = vmatpush1.msra.mxu0 0.0
  %693 = vmatprep.subr.mxu0 0.0
  %694 = vmatpush1.msra.mxu0 0.0
  %695 = vmatprep.subr.mxu0 0.0
  %696 = vmatpush1.msra.mxu0 0.0
  %697 = vmatprep.subr.mxu0 0.0
  %698 = vmatpush1.msra.mxu0 0.0
  %699 = vmatprep.subr.mxu0 0.0
  %700 = vmatpush1.msra.mxu0 0.0
  %701 = vmatprep.subr.mxu0 0.0
  %702 = vmatpush1.msra.mxu0 0.0
  %703 = vmatprep.subr.mxu0 0.0
  %704 = vmatpush1.msra.mxu0 0.0
  %705 = vmatprep.subr.mxu0 0.0
  %706 = vmatpush1.msra.mxu0 0.0
  %707 = vmatprep.subr.mxu0 0.0
  %708 = vmatpush1.msra.mxu0 0.0
  %709 = vmatprep.subr.mxu0 0.0
  %710 = vmatpush1.msra.mxu0 0.0
  %711 = vmatprep.subr.mxu0 0.0
  %712 = vmatpush1.msra.mxu0 0.0
  %713 = vmatprep.subr.mxu0 0.0
  %714 = vmatpush1.msra.mxu0 0.0
  %715 = vmatprep.subr.mxu0 0.0
  %716 = vmatpush1.msra.mxu0 0.0
  %717 = vmatprep.subr.mxu0 0.0
  %718 = vmatpush1.msra.mxu0 0.0
  %719 = vmatprep.subr.mxu0 0.0
  %720 = vmatpush1.msra.mxu0 0.0
  %721 = vmatprep.subr.mxu0 0.0
  %722 = vmatpush1.msra.mxu0 0.0
  %723 = vmatprep.subr.mxu0 0.0
  %724 = vmatpush1.msra.mxu0 0.0
  %725 = vmatprep.mubr.f32.mxu0 0.0
  %726 = vmatmul.mubr.f32.gmra.mrb[0].mxu0 %v564
  %v727 = vpop.f32.mrb[0].mxu0
  %v728 = vadd.f32 %v394, %v727
  %v729 = vpop.f32.mrb[0].mxu0
  %730 = vdwg.mxu0
  %732 = vrot.lane.b32.xlu0 %v560, 32
  %v733 = vpop.permute.xlu0 %732
  %v734 = vsel %vm191, %v733, 0
  %736 = vmatprep.subr.mxu0 0.0
  %737 = vmatpush1.msra.mxu0 %v31
  %738 = vmatprep.subr.mxu0 0.0
  %739 = vmatpush1.msra.mxu0 %v32
  %740 = vmatprep.subr.mxu0 0.0
  %741 = vmatpush1.msra.mxu0 %v33
  %742 = vmatprep.subr.mxu0 0.0
  %743 = vmatpush1.msra.mxu0 %v34
  %744 = vmatprep.subr.mxu0 0.0
  %745 = vmatpush1.msra.mxu0 0.0
  %746 = vmatprep.subr.mxu0 0.0
  %747 = vmatpush1.msra.mxu0 0.0
  %748 = vmatprep.subr.mxu0 0.0
  %749 = vmatpush1.msra.mxu0 0.0
  %750 = vmatprep.subr.mxu0 0.0
  %751 = vmatpush1.msra.mxu0 0.0
  %752 = vmatprep.subr.mxu0 0.0
  %753 = vmatpush1.msra.mxu0 0.0
  %754 = vmatprep.subr.mxu0 0.0
  %755 = vmatpush1.msra.mxu0 0.0
  %756 = vmatprep.subr.mxu0 0.0
  %757 = vmatpush1.msra.mxu0 0.0
  %758 = vmatprep.subr.mxu0 0.0
  %759 = vmatpush1.msra.mxu0 0.0
  %760 = vmatprep.subr.mxu0 0.0
  %761 = vmatpush1.msra.mxu0 0.0
  %762 = vmatprep.subr.mxu0 0.0
  %763 = vmatpush1.msra.mxu0 0.0
  %764 = vmatprep.subr.mxu0 0.0
  %765 = vmatpush1.msra.mxu0 0.0
  %766 = vmatprep.subr.mxu0 0.0
  %767 = vmatpush1.msra.mxu0 0.0
  %768 = vmatprep.subr.mxu0 0.0
  %769 = vmatpush1.msra.mxu0 0.0
  %770 = vmatprep.subr.mxu0 0.0
  %771 = vmatpush1.msra.mxu0 0.0
  %772 = vmatprep.subr.mxu0 0.0
  %773 = vmatpush1.msra.mxu0 0.0
  %774 = vmatprep.subr.mxu0 0.0
  %775 = vmatpush1.msra.mxu0 0.0
  %776 = vmatprep.subr.mxu0 0.0
  %777 = vmatpush1.msra.mxu0 0.0
  %778 = vmatprep.subr.mxu0 0.0
  %779 = vmatpush1.msra.mxu0 0.0
  %780 = vmatprep.subr.mxu0 0.0
  %781 = vmatpush1.msra.mxu0 0.0
  %782 = vmatprep.subr.mxu0 0.0
  %783 = vmatpush1.msra.mxu0 0.0
  %784 = vmatprep.subr.mxu0 0.0
  %785 = vmatpush1.msra.mxu0 0.0
  %786 = vmatprep.subr.mxu0 0.0
  %787 = vmatpush1.msra.mxu0 0.0
  %788 = vmatprep.subr.mxu0 0.0
  %789 = vmatpush1.msra.mxu0 0.0
  %790 = vmatprep.subr.mxu0 0.0
  %791 = vmatpush1.msra.mxu0 0.0
  %792 = vmatprep.subr.mxu0 0.0
  %793 = vmatpush1.msra.mxu0 0.0
  %794 = vmatprep.subr.mxu0 0.0
  %795 = vmatpush1.msra.mxu0 0.0
  %796 = vmatprep.subr.mxu0 0.0
  %797 = vmatpush1.msra.mxu0 0.0
  %798 = vmatprep.subr.mxu0 0.0
  %799 = vmatpush1.msra.mxu0 0.0
  %800 = vmatprep.mubr.f32.mxu0 0.0
  %801 = vmatmul.mubr.f32.gmra.mrb[0].mxu0 %v734
  %v802 = vpop.f32.mrb[0].mxu0
  %v803 = vadd.f32 0.0, %v802
  %v804 = vpop.f32.mrb[0].mxu0
  %805 = vdwg.mxu0
  %v806 = vadd.f32 %v728, %v803
  %v807 = vxor.u32 %v806, 2147483648
  %v808 = vmul.f32 %v807, 1.442695
  %v809 = vpow.pop %v808
  %v810 = vadd.f32 %v809, 1.0
  %v811 = vrcp.pop %v810
  %v812 = vmul.f32 1.0, %v811
  %v813 = vtanh.pop %v806
  %v814 = vmul.f32 %v812, %v554
  %816 = vrot.lane.b32.xlu0 %v813, 64
  %v817 = vpop.permute.xlu0 %816
  %v819 = vmul.f32 %v812, %v817
  %821 = vrot.lane.b32.xlu0 %v819, 32
  %v822 = vpop.permute.xlu0 %821
  %v824 = vadd.f32 %v814, %v822
  %v825 = vtanh.pop %v824
  %827 = vrot.lane.b32.xlu0 %v825, 64
  %v828 = vpop.permute.xlu0 %827
  %v830 = vmul.f32 %v812, %v828
  %832 = vrot.lane.b32.xlu0 %v660, 32
  %v833 = vpop.permute.xlu0 %832
  %v834 = vsel %vm191, %v833, 0
  %836 = vmatprep.subr.mxu0 0.0
  %837 = vmatpush1.msra.mxu0 %v26
  %838 = vmatprep.subr.mxu0 0.0
  %839 = vmatpush1.msra.mxu0 %v27
  %840 = vmatprep.subr.mxu0 0.0
  %841 = vmatpush1.msra.mxu0 %v28
  %842 = vmatprep.subr.mxu0 0.0
  %843 = vmatpush1.msra.mxu0 %v29
  %844 = vmatprep.subr.mxu0 0.0
  %845 = vmatpush1.msra.mxu0 0.0
  %846 = vmatprep.subr.mxu0 0.0
  %847 = vmatpush1.msra.mxu0 0.0
  %848 = vmatprep.subr.mxu0 0.0
  %849 = vmatpush1.msra.mxu0 0.0
  %850 = vmatprep.subr.mxu0 0.0
  %851 = vmatpush1.msra.mxu0 0.0
  %852 = vmatprep.subr.mxu0 0.0
  %853 = vmatpush1.msra.mxu0 0.0
  %854 = vmatprep.subr.mxu0 0.0
  %855 = vmatpush1.msra.mxu0 0.0
  %856 = vmatprep.subr.mxu0 0.0
  %857 = vmatpush1.msra.mxu0 0.0
  %858 = vmatprep.subr.mxu0 0.0
  %859 = vmatpush1.msra.mxu0 0.0
  %860 = vmatprep.subr.mxu0 0.0
  %861 = vmatpush1.msra.mxu0 0.0
  %862 = vmatprep.subr.mxu0 0.0
  %863 = vmatpush1.msra.mxu0 0.0
  %864 = vmatprep.subr.mxu0 0.0
  %865 = vmatpush1.msra.mxu0 0.0
  %866 = vmatprep.subr.mxu0 0.0
  %867 = vmatpush1.msra.mxu0 0.0
  %868 = vmatprep.subr.mxu0 0.0
  %869 = vmatpush1.msra.mxu0 0.0
  %870 = vmatprep.subr.mxu0 0.0
  %871 = vmatpush1.msra.mxu0 0.0
  %872 = vmatprep.subr.mxu0 0.0
  %873 = vmatpush1.msra.mxu0 0.0
  %874 = vmatprep.subr.mxu0 0.0
  %875 = vmatpush1.msra.mxu0 0.0
  %876 = vmatprep.subr.mxu0 0.0
  %877 = vmatpush1.msra.mxu0 0.0
  %878 = vmatprep.subr.mxu0 0.0
  %879 = vmatpush1.msra.mxu0 0.0
  %880 = vmatprep.subr.mxu0 0.0
  %881 = vmatpush1.msra.mxu0 0.0
  %882 = vmatprep.subr.mxu0 0.0
  %883 = vmatpush1.msra.mxu0 0.0
  %884 = vmatprep.subr.mxu0 0.0
  %885 = vmatpush1.msra.mxu0 0.0
  %886 = vmatprep.subr.mxu0 0.0
  %887 = vmatpush1.msra.mxu0 0.0
  %888 = vmatprep.subr.mxu0 0.0
  %889 = vmatpush1.msra.mxu0 0.0
  %890 = vmatprep.subr.mxu0 0.0
  %891 = vmatpush1.msra.mxu0 0.0
  %892 = vmatprep.subr.mxu0 0.0
  %893 = vmatpush1.msra.mxu0 0.0
  %894 = vmatprep.subr.mxu0 0.0
  %895 = vmatpush1.msra.mxu0 0.0
  %896 = vmatprep.subr.mxu0 0.0
  %897 = vmatpush1.msra.mxu0 0.0
  %898 = vmatprep.subr.mxu0 0.0
  %899 = vmatpush1.msra.mxu0 0.0
  %900 = vmatprep.mubr.f32.mxu0 0.0
  %901 = vmatmul.mubr.f32.gmra.mrb[0].mxu0 %v834
  %v902 = vpop.f32.mrb[0].mxu0
  %v903 = vadd.f32 0.0, %v902
  %v904 = vpop.f32.mrb[0].mxu0
  %905 = vdwg.mxu0
  %v906 = vadd.f32 %v168, %v903
  %v907 = vxor.u32 %v906, 2147483648
  %v908 = vmul.f32 %v907, 1.442695
  %v909 = vpow.pop %v908
  %v910 = vadd.f32 %v909, 1.0
  %v911 = vrcp.pop %v910
  %v912 = vmul.f32 1.0, %v911
  %v913 = vtanh.pop %v906
  %v914 = vmul.f32 %v912, %v654
  %916 = vrot.lane.b32.xlu0 %v913, 64
  %v917 = vpop.permute.xlu0 %916
  %v919 = vmul.f32 %v912, %v917
  %921 = vrot.lane.b32.xlu0 %v919, 32
  %v922 = vpop.permute.xlu0 %921
  %v924 = vadd.f32 %v914, %v922
  %v925 = vtanh.pop %v924
  %927 = vrot.lane.b32.xlu0 %v925, 64
  %v928 = vpop.permute.xlu0 %927
  %v930 = vmul.f32 %v912, %v928
  %931 = vmatprep.subr.mxu0 0.0
  %932 = vmatpush1.msra.mxu0 %v38
  %933 = vmatprep.subr.mxu0 0.0
  %934 = vmatpush1.msra.mxu0 %v39
  %935 = vmatprep.subr.mxu0 0.0
  %936 = vmatpush1.msra.mxu0 %v40
  %937 = vmatprep.subr.mxu0 0.0
  %938 = vmatpush1.msra.mxu0 %v41
  %939 = vmatprep.subr.mxu0 0.0
  %940 = vmatpush1.msra.mxu0 0.0
  %941 = vmatprep.subr.mxu0 0.0
  %942 = vmatpush1.msra.mxu0 0.0
  %943 = vmatprep.subr.mxu0 0.0
  %944 = vmatpush1.msra.mxu0 0.0
  %945 = vmatprep.subr.mxu0 0.0
  %946 = vmatpush1.msra.mxu0 0.0
  %947 = vmatprep.subr.mxu0 0.0
  %948 = vmatpush1.msra.mxu0 0.0
  %949 = vmatprep.subr.mxu0 0.0
  %950 = vmatpush1.msra.mxu0 0.0
  %951 = vmatprep.subr.mxu0 0.0
  %952 = vmatpush1.msra.mxu0 0.0
  %953 = vmatprep.subr.mxu0 0.0
  %954 = vmatpush1.msra.mxu0 0.0
  %955 = vmatprep.subr.mxu0 0.0
  %956 = vmatpush1.msra.mxu0 0.0
  %957 = vmatprep.subr.mxu0 0.0
  %958 = vmatpush1.msra.mxu0 0.0
  %959 = vmatprep.subr.mxu0 0.0
  %960 = vmatpush1.msra.mxu0 0.0
  %961 = vmatprep.subr.mxu0 0.0
  %962 = vmatpush1.msra.mxu0 0.0
  %963 = vmatprep.subr.mxu0 0.0
  %964 = vmatpush1.msra.mxu0 0.0
  %965 = vmatprep.subr.mxu0 0.0
  %966 = vmatpush1.msra.mxu0 0.0
  %967 = vmatprep.subr.mxu0 0.0
  %968 = vmatpush1.msra.mxu0 0.0
  %969 = vmatprep.subr.mxu0 0.0
  %970 = vmatpush1.msra.mxu0 0.0
  %971 = vmatprep.subr.mxu0 0.0
  %972 = vmatpush1.msra.mxu0 0.0
  %973 = vmatprep.subr.mxu0 0.0
  %974 = vmatpush1.msra.mxu0 0.0
  %975 = vmatprep.subr.mxu0 0.0
  %976 = vmatpush1.msra.mxu0 0.0
  %977 = vmatprep.subr.mxu0 0.0
  %978 = vmatpush1.msra.mxu0 0.0
  %979 = vmatprep.subr.mxu0 0.0
  %980 = vmatpush1.msra.mxu0 0.0
  %981 = vmatprep.subr.mxu0 0.0
  %982 = vmatpush1.msra.mxu0 0.0
  %983 = vmatprep.subr.mxu0 0.0
  %984 = vmatpush1.msra.mxu0 0.0
  %985 = vmatprep.subr.mxu0 0.0
  %986 = vmatpush1.msra.mxu0 0.0
  %987 = vmatprep.subr.mxu0 0.0
  %988 = vmatpush1.msra.mxu0 0.0
  %989 = vmatprep.subr.mxu0 0.0
  %990 = vmatpush1.msra.mxu0 0.0
  %991 = vmatprep.subr.mxu0 0.0
  %992 = vmatpush1.msra.mxu0 0.0
  %993 = vmatprep.subr.mxu0 0.0
  %994 = vmatpush1.msra.mxu0 0.0
  %995 = vmatprep.mubr.f32.mxu0 0.0
  %996 = vmatmul.mubr.f32.gmra.mrb[0].mxu0 %v834
  %v997 = vpop.f32.mrb[0].mxu0
  %v998 = vadd.f32 %v394, %v997
  %v999 = vpop.f32.mrb[0].mxu0
  %1000 = vdwg.mxu0
  %1002 = vrot.lane.b32.xlu0 %v830, 32
  %v1003 = vpop.permute.xlu0 %1002
  %v1004 = vsel %vm191, %v1003, 0
  %1006 = vmatprep.subr.mxu0 0.0
  %1007 = vmatpush1.msra.mxu0 %v31
  %1008 = vmatprep.subr.mxu0 0.0
  %1009 = vmatpush1.msra.mxu0 %v32
  %1010 = vmatprep.subr.mxu0 0.0
  %1011 = vmatpush1.msra.mxu0 %v33
  %1012 = vmatprep.subr.mxu0 0.0
  %1013 = vmatpush1.msra.mxu0 %v34
  %1014 = vmatprep.subr.mxu0 0.0
  %1015 = vmatpush1.msra.mxu0 0.0
  %1016 = vmatprep.subr.mxu0 0.0
  %1017 = vmatpush1.msra.mxu0 0.0
  %1018 = vmatprep.subr.mxu0 0.0
  %1019 = vmatpush1.msra.mxu0 0.0
  %1020 = vmatprep.subr.mxu0 0.0
  %1021 = vmatpush1.msra.mxu0 0.0
  %1022 = vmatprep.subr.mxu0 0.0
  %1023 = vmatpush1.msra.mxu0 0.0
  %1024 = vmatprep.subr.mxu0 0.0
  %1025 = vmatpush1.msra.mxu0 0.0
  %1026 = vmatprep.subr.mxu0 0.0
  %1027 = vmatpush1.msra.mxu0 0.0
  %1028 = vmatprep.subr.mxu0 0.0
  %1029 = vmatpush1.msra.mxu0 0.0
  %1030 = vmatprep.subr.mxu0 0.0
  %1031 = vmatpush1.msra.mxu0 0.0
  %1032 = vmatprep.subr.mxu0 0.0
  %1033 = vmatpush1.msra.mxu0 0.0
  %1034 = vmatprep.subr.mxu0 0.0
  %1035 = vmatpush1.msra.mxu0 0.0
  %1036 = vmatprep.subr.mxu0 0.0
  %1037 = vmatpush1.msra.mxu0 0.0
  %1038 = vmatprep.subr.mxu0 0.0
  %1039 = vmatpush1.msra.mxu0 0.0
  %1040 = vmatprep.subr.mxu0 0.0
  %1041 = vmatpush1.msra.mxu0 0.0
  %1042 = vmatprep.subr.mxu0 0.0
  %1043 = vmatpush1.msra.mxu0 0.0
  %1044 = vmatprep.subr.mxu0 0.0
  %1045 = vmatpush1.msra.mxu0 0.0
  %1046 = vmatprep.subr.mxu0 0.0
  %1047 = vmatpush1.msra.mxu0 0.0
  %1048 = vmatprep.subr.mxu0 0.0
  %1049 = vmatpush1.msra.mxu0 0.0
  %1050 = vmatprep.subr.mxu0 0.0
  %1051 = vmatpush1.msra.mxu0 0.0
  %1052 = vmatprep.subr.mxu0 0.0
  %1053 = vmatpush1.msra.mxu0 0.0
  %1054 = vmatprep.subr.mxu0 0.0
  %1055 = vmatpush1.msra.mxu0 0.0
  %1056 = vmatprep.subr.mxu0 0.0
  %1057 = vmatpush1.msra.mxu0 0.0
  %1058 = vmatprep.subr.mxu0 0.0
  %1059 = vmatpush1.msra.mxu0 0.0
  %1060 = vmatprep.subr.mxu0 0.0
  %1061 = vmatpush1.msra.mxu0 0.0
  %1062 = vmatprep.subr.mxu0 0.0
  %1063 = vmatpush1.msra.mxu0 0.0
  %1064 = vmatprep.subr.mxu0 0.0
  %1065 = vmatpush1.msra.mxu0 0.0
  %1066 = vmatprep.subr.mxu0 0.0
  %1067 = vmatpush1.msra.mxu0 0.0
  %1068 = vmatprep.subr.mxu0 0.0
  %1069 = vmatpush1.msra.mxu0 0.0
  %1070 = vmatprep.mubr.f32.mxu0 0.0
  %1071 = vmatmul.mubr.f32.gmra.mrb[0].mxu0 %v1004
  %v1072 = vpop.f32.mrb[0].mxu0
  %v1073 = vadd.f32 0.0, %v1072
  %v1074 = vpop.f32.mrb[0].mxu0
  %1075 = vdwg.mxu0
  %v1076 = vadd.f32 %v998, %v1073
  %v1077 = vxor.u32 %v1076, 2147483648
  %v1078 = vmul.f32 %v1077, 1.442695
  %v1079 = vpow.pop %v1078
  %v1080 = vadd.f32 %v1079, 1.0
  %v1081 = vrcp.pop %v1080
  %v1082 = vmul.f32 1.0, %v1081
  %v1083 = vtanh.pop %v1076
  %v1084 = vmul.f32 %v1082, %v824
  %1086 = vrot.lane.b32.xlu0 %v1083, 64
  %v1087 = vpop.permute.xlu0 %1086
  %v1089 = vmul.f32 %v1082, %v1087
  %1091 = vrot.lane.b32.xlu0 %v1089, 32
  %v1092 = vpop.permute.xlu0 %1091
  %v1094 = vadd.f32 %v1084, %v1092
  %v1095 = vtanh.pop %v1094
  %1097 = vrot.lane.b32.xlu0 %v1095, 64
  %v1098 = vpop.permute.xlu0 %1097
  %v1100 = vmul.f32 %v1082, %v1098
  %1102 = vrot.lane.b32.xlu0 %v930, 32
  %v1103 = vpop.permute.xlu0 %1102
  %v1104 = vsel %vm191, %v1103, 0
  %1106 = vmatprep.subr.mxu0 0.0
  %1107 = vmatpush1.msra.mxu0 %v26
  %1108 = vmatprep.subr.mxu0 0.0
  %1109 = vmatpush1.msra.mxu0 %v27
  %1110 = vmatprep.subr.mxu0 0.0
  %1111 = vmatpush1.msra.mxu0 %v28
  %1112 = vmatprep.subr.mxu0 0.0
  %1113 = vmatpush1.msra.mxu0 %v29
  %1114 = vmatprep.subr.mxu0 0.0
  %1115 = vmatpush1.msra.mxu0 0.0
  %1116 = vmatprep.subr.mxu0 0.0
  %1117 = vmatpush1.msra.mxu0 0.0
  %1118 = vmatprep.subr.mxu0 0.0
  %1119 = vmatpush1.msra.mxu0 0.0
  %1120 = vmatprep.subr.mxu0 0.0
  %1121 = vmatpush1.msra.mxu0 0.0
  %1122 = vmatprep.subr.mxu0 0.0
  %1123 = vmatpush1.msra.mxu0 0.0
  %1124 = vmatprep.subr.mxu0 0.0
  %1125 = vmatpush1.msra.mxu0 0.0
  %1126 = vmatprep.subr.mxu0 0.0
  %1127 = vmatpush1.msra.mxu0 0.0
  %1128 = vmatprep.subr.mxu0 0.0
  %1129 = vmatpush1.msra.mxu0 0.0
  %1130 = vmatprep.subr.mxu0 0.0
  %1131 = vmatpush1.msra.mxu0 0.0
  %1132 = vmatprep.subr.mxu0 0.0
  %1133 = vmatpush1.msra.mxu0 0.0
  %1134 = vmatprep.subr.mxu0 0.0
  %1135 = vmatpush1.msra.mxu0 0.0
  %1136 = vmatprep.subr.mxu0 0.0
  %1137 = vmatpush1.msra.mxu0 0.0
  %1138 = vmatprep.subr.mxu0 0.0
  %1139 = vmatpush1.msra.mxu0 0.0
  %1140 = vmatprep.subr.mxu0 0.0
  %1141 = vmatpush1.msra.mxu0 0.0
  %1142 = vmatprep.subr.mxu0 0.0
  %1143 = vmatpush1.msra.mxu0 0.0
  %1144 = vmatprep.subr.mxu0 0.0
  %1145 = vmatpush1.msra.mxu0 0.0
  %1146 = vmatprep.subr.mxu0 0.0
  %1147 = vmatpush1.msra.mxu0 0.0
  %1148 = vmatprep.subr.mxu0 0.0
  %1149 = vmatpush1.msra.mxu0 0.0
  %1150 = vmatprep.subr.mxu0 0.0
  %1151 = vmatpush1.msra.mxu0 0.0
  %1152 = vmatprep.subr.mxu0 0.0
  %1153 = vmatpush1.msra.mxu0 0.0
  %1154 = vmatprep.subr.mxu0 0.0
  %1155 = vmatpush1.msra.mxu0 0.0
  %1156 = vmatprep.subr.mxu0 0.0
  %1157 = vmatpush1.msra.mxu0 0.0
  %1158 = vmatprep.subr.mxu0 0.0
  %1159 = vmatpush1.msra.mxu0 0.0
  %1160 = vmatprep.subr.mxu0 0.0
  %1161 = vmatpush1.msra.mxu0 0.0
  %1162 = vmatprep.subr.mxu0 0.0
  %1163 = vmatpush1.msra.mxu0 0.0
  %1164 = vmatprep.subr.mxu0 0.0
  %1165 = vmatpush1.msra.mxu0 0.0
  %1166 = vmatprep.subr.mxu0 0.0
  %1167 = vmatpush1.msra.mxu0 0.0
  %1168 = vmatprep.subr.mxu0 0.0
  %1169 = vmatpush1.msra.mxu0 0.0
  %1170 = vmatprep.mubr.f32.mxu0 0.0
  %1171 = vmatmul.mubr.f32.gmra.mrb[0].mxu0 %v1104
  %v1172 = vpop.f32.mrb[0].mxu0
  %v1173 = vadd.f32 0.0, %v1172
  %v1174 = vpop.f32.mrb[0].mxu0
  %1175 = vdwg.mxu0
  %v1176 = vadd.f32 %v173, %v1173
  %v1177 = vxor.u32 %v1176, 2147483648
  %v1178 = vmul.f32 %v1177, 1.442695
  %v1179 = vpow.pop %v1178
  %v1180 = vadd.f32 %v1179, 1.0
  %v1181 = vrcp.pop %v1180
  %v1182 = vmul.f32 1.0, %v1181
  %v1183 = vtanh.pop %v1176
  %v1184 = vmul.f32 %v1182, %v924
  %1186 = vrot.lane.b32.xlu0 %v1183, 64
  %v1187 = vpop.permute.xlu0 %1186
  %v1189 = vmul.f32 %v1182, %v1187
  %1191 = vrot.lane.b32.xlu0 %v1189, 32
  %v1192 = vpop.permute.xlu0 %1191
  %v1194 = vadd.f32 %v1184, %v1192
  %v1195 = vtanh.pop %v1194
  %1197 = vrot.lane.b32.xlu0 %v1195, 64
  %v1198 = vpop.permute.xlu0 %1197
  %v1200 = vmul.f32 %v1182, %v1198
  %1201 = vmatprep.subr.mxu0 0.0
  %1202 = vmatpush1.msra.mxu0 %v38
  %1203 = vmatprep.subr.mxu0 0.0
  %1204 = vmatpush1.msra.mxu0 %v39
  %1205 = vmatprep.subr.mxu0 0.0
  %1206 = vmatpush1.msra.mxu0 %v40
  %1207 = vmatprep.subr.mxu0 0.0
  %1208 = vmatpush1.msra.mxu0 %v41
  %1209 = vmatprep.subr.mxu0 0.0
  %1210 = vmatpush1.msra.mxu0 0.0
  %1211 = vmatprep.subr.mxu0 0.0
  %1212 = vmatpush1.msra.mxu0 0.0
  %1213 = vmatprep.subr.mxu0 0.0
  %1214 = vmatpush1.msra.mxu0 0.0
  %1215 = vmatprep.subr.mxu0 0.0
  %1216 = vmatpush1.msra.mxu0 0.0
  %1217 = vmatprep.subr.mxu0 0.0
  %1218 = vmatpush1.msra.mxu0 0.0
  %1219 = vmatprep.subr.mxu0 0.0
  %1220 = vmatpush1.msra.mxu0 0.0
  %1221 = vmatprep.subr.mxu0 0.0
  %1222 = vmatpush1.msra.mxu0 0.0
  %1223 = vmatprep.subr.mxu0 0.0
  %1224 = vmatpush1.msra.mxu0 0.0
  %1225 = vmatprep.subr.mxu0 0.0
  %1226 = vmatpush1.msra.mxu0 0.0
  %1227 = vmatprep.subr.mxu0 0.0
  %1228 = vmatpush1.msra.mxu0 0.0
  %1229 = vmatprep.subr.mxu0 0.0
  %1230 = vmatpush1.msra.mxu0 0.0
  %1231 = vmatprep.subr.mxu0 0.0
  %1232 = vmatpush1.msra.mxu0 0.0
  %1233 = vmatprep.subr.mxu0 0.0
  %1234 = vmatpush1.msra.mxu0 0.0
  %1235 = vmatprep.subr.mxu0 0.0
  %1236 = vmatpush1.msra.mxu0 0.0
  %1237 = vmatprep.subr.mxu0 0.0
  %1238 = vmatpush1.msra.mxu0 0.0
  %1239 = vmatprep.subr.mxu0 0.0
  %1240 = vmatpush1.msra.mxu0 0.0
  %1241 = vmatprep.subr.mxu0 0.0
  %1242 = vmatpush1.msra.mxu0 0.0
  %1243 = vmatprep.subr.mxu0 0.0
  %1244 = vmatpush1.msra.mxu0 0.0
  %1245 = vmatprep.subr.mxu0 0.0
  %1246 = vmatpush1.msra.mxu0 0.0
  %1247 = vmatprep.subr.mxu0 0.0
  %1248 = vmatpush1.msra.mxu0 0.0
  %1249 = vmatprep.subr.mxu0 0.0
  %1250 = vmatpush1.msra.mxu0 0.0
  %1251 = vmatprep.subr.mxu0 0.0
  %1252 = vmatpush1.msra.mxu0 0.0
  %1253 = vmatprep.subr.mxu0 0.0
  %1254 = vmatpush1.msra.mxu0 0.0
  %1255 = vmatprep.subr.mxu0 0.0
  %1256 = vmatpush1.msra.mxu0 0.0
  %1257 = vmatprep.subr.mxu0 0.0
  %1258 = vmatpush1.msra.mxu0 0.0
  %1259 = vmatprep.subr.mxu0 0.0
  %1260 = vmatpush1.msra.mxu0 0.0
  %1261 = vmatprep.subr.mxu0 0.0
  %1262 = vmatpush1.msra.mxu0 0.0
  %1263 = vmatprep.subr.mxu0 0.0
  %1264 = vmatpush1.msra.mxu0 0.0
  %1265 = vmatprep.mubr.f32.mxu0 0.0
  %1266 = vmatmul.mubr.f32.gmra.mrb[0].mxu0 %v1104
  %v1267 = vpop.f32.mrb[0].mxu0
  %v1268 = vadd.f32 %v394, %v1267
  %v1269 = vpop.f32.mrb[0].mxu0
  %1270 = vdwg.mxu0
  %1272 = vrot.lane.b32.xlu0 %v1100, 32
  %v1273 = vpop.permute.xlu0 %1272
  %v1274 = vsel %vm191, %v1273, 0
  %1276 = vmatprep.subr.mxu0 0.0
  %1277 = vmatpush1.msra.mxu0 %v31
  %1278 = vmatprep.subr.mxu0 0.0
  %1279 = vmatpush1.msra.mxu0 %v32
  %1280 = vmatprep.subr.mxu0 0.0
  %1281 = vmatpush1.msra.mxu0 %v33
  %1282 = vmatprep.subr.mxu0 0.0
  %1283 = vmatpush1.msra.mxu0 %v34
  %1284 = vmatprep.subr.mxu0 0.0
  %1285 = vmatpush1.msra.mxu0 0.0
  %1286 = vmatprep.subr.mxu0 0.0
  %1287 = vmatpush1.msra.mxu0 0.0
  %1288 = vmatprep.subr.mxu0 0.0
  %1289 = vmatpush1.msra.mxu0 0.0
  %1290 = vmatprep.subr.mxu0 0.0
  %1291 = vmatpush1.msra.mxu0 0.0
  %1292 = vmatprep.subr.mxu0 0.0
  %1293 = vmatpush1.msra.mxu0 0.0
  %1294 = vmatprep.subr.mxu0 0.0
  %1295 = vmatpush1.msra.mxu0 0.0
  %1296 = vmatprep.subr.mxu0 0.0
  %1297 = vmatpush1.msra.mxu0 0.0
  %1298 = vmatprep.subr.mxu0 0.0
  %1299 = vmatpush1.msra.mxu0 0.0
  %1300 = vmatprep.subr.mxu0 0.0
  %1301 = vmatpush1.msra.mxu0 0.0
  %1302 = vmatprep.subr.mxu0 0.0
  %1303 = vmatpush1.msra.mxu0 0.0
  %1304 = vmatprep.subr.mxu0 0.0
  %1305 = vmatpush1.msra.mxu0 0.0
  %1306 = vmatprep.subr.mxu0 0.0
  %1307 = vmatpush1.msra.mxu0 0.0
  %1308 = vmatprep.subr.mxu0 0.0
  %1309 = vmatpush1.msra.mxu0 0.0
  %1310 = vmatprep.subr.mxu0 0.0
  %1311 = vmatpush1.msra.mxu0 0.0
  %1312 = vmatprep.subr.mxu0 0.0
  %1313 = vmatpush1.msra.mxu0 0.0
  %1314 = vmatprep.subr.mxu0 0.0
  %1315 = vmatpush1.msra.mxu0 0.0
  %1316 = vmatprep.subr.mxu0 0.0
  %1317 = vmatpush1.msra.mxu0 0.0
  %1318 = vmatprep.subr.mxu0 0.0
  %1319 = vmatpush1.msra.mxu0 0.0
  %1320 = vmatprep.subr.mxu0 0.0
  %1321 = vmatpush1.msra.mxu0 0.0
  %1322 = vmatprep.subr.mxu0 0.0
  %1323 = vmatpush1.msra.mxu0 0.0
  %1324 = vmatprep.subr.mxu0 0.0
  %1325 = vmatpush1.msra.mxu0 0.0
  %1326 = vmatprep.subr.mxu0 0.0
  %1327 = vmatpush1.msra.mxu0 0.0
  %1328 = vmatprep.subr.mxu0 0.0
  %1329 = vmatpush1.msra.mxu0 0.0
  %1330 = vmatprep.subr.mxu0 0.0
  %1331 = vmatpush1.msra.mxu0 0.0
  %1332 = vmatprep.subr.mxu0 0.0
  %1333 = vmatpush1.msra.mxu0 0.0
  %1334 = vmatprep.subr.mxu0 0.0
  %1335 = vmatpush1.msra.mxu0 0.0
  %1336 = vmatprep.subr.mxu0 0.0
  %1337 = vmatpush1.msra.mxu0 0.0
  %1338 = vmatprep.subr.mxu0 0.0
  %1339 = vmatpush1.msra.mxu0 0.0
  %1340 = vmatprep.mubr.f32.mxu0 0.0
  %1341 = vmatmul.mubr.f32.gmra.mrb[0].mxu0 %v1274
  %v1342 = vpop.f32.mrb[0].mxu0
  %v1343 = vadd.f32 0.0, %v1342
  %v1344 = vpop.f32.mrb[0].mxu0
  %1345 = vdwg.mxu0
  %v1346 = vadd.f32 %v1268, %v1343
  %v1347 = vxor.u32 %v1346, 2147483648
  %v1348 = vmul.f32 %v1347, 1.442695
  %v1349 = vpow.pop %v1348
  %v1350 = vadd.f32 %v1349, 1.0
  %v1351 = vrcp.pop %v1350
  %v1352 = vmul.f32 1.0, %v1351
  %v1353 = vtanh.pop %v1346
  %v1354 = vmul.f32 %v1352, %v1094
  %1356 = vrot.lane.b32.xlu0 %v1353, 64
  %v1357 = vpop.permute.xlu0 %1356
  %v1359 = vmul.f32 %v1352, %v1357
  %1361 = vrot.lane.b32.xlu0 %v1359, 32
  %v1362 = vpop.permute.xlu0 %1361
  %v1364 = vadd.f32 %v1354, %v1362
  %v1365 = vtanh.pop %v1364
  %1367 = vrot.lane.b32.xlu0 %v1365, 64
  %v1368 = vpop.permute.xlu0 %1367
  %v1370 = vmul.f32 %v1352, %v1368
  %1372 = vrot.lane.b32.xlu0 %v1200, 32
  %v1373 = vpop.permute.xlu0 %1372
  %v1374 = vsel %vm191, %v1373, 0
  %1376 = vmatprep.subr.mxu0 0.0
  %1377 = vmatpush1.msra.mxu0 %v26
  %1378 = vmatprep.subr.mxu0 0.0
  %1379 = vmatpush1.msra.mxu0 %v27
  %1380 = vmatprep.subr.mxu0 0.0
  %1381 = vmatpush1.msra.mxu0 %v28
  %1382 = vmatprep.subr.mxu0 0.0
  %1383 = vmatpush1.msra.mxu0 %v29
  %1384 = vmatprep.subr.mxu0 0.0
  %1385 = vmatpush1.msra.mxu0 0.0
  %1386 = vmatprep.subr.mxu0 0.0
  %1387 = vmatpush1.msra.mxu0 0.0
  %1388 = vmatprep.subr.mxu0 0.0
  %1389 = vmatpush1.msra.mxu0 0.0
  %1390 = vmatprep.subr.mxu0 0.0
  %1391 = vmatpush1.msra.mxu0 0.0
  %1392 = vmatprep.subr.mxu0 0.0
  %1393 = vmatpush1.msra.mxu0 0.0
  %1394 = vmatprep.subr.mxu0 0.0
  %1395 = vmatpush1.msra.mxu0 0.0
  %1396 = vmatprep.subr.mxu0 0.0
  %1397 = vmatpush1.msra.mxu0 0.0
  %1398 = vmatprep.subr.mxu0 0.0
  %1399 = vmatpush1.msra.mxu0 0.0
  %1400 = vmatprep.subr.mxu0 0.0
  %1401 = vmatpush1.msra.mxu0 0.0
  %1402 = vmatprep.subr.mxu0 0.0
  %1403 = vmatpush1.msra.mxu0 0.0
  %1404 = vmatprep.subr.mxu0 0.0
  %1405 = vmatpush1.msra.mxu0 0.0
  %1406 = vmatprep.subr.mxu0 0.0
  %1407 = vmatpush1.msra.mxu0 0.0
  %1408 = vmatprep.subr.mxu0 0.0
  %1409 = vmatpush1.msra.mxu0 0.0
  %1410 = vmatprep.subr.mxu0 0.0
  %1411 = vmatpush1.msra.mxu0 0.0
  %1412 = vmatprep.subr.mxu0 0.0
  %1413 = vmatpush1.msra.mxu0 0.0
  %1414 = vmatprep.subr.mxu0 0.0
  %1415 = vmatpush1.msra.mxu0 0.0
  %1416 = vmatprep.subr.mxu0 0.0
  %1417 = vmatpush1.msra.mxu0 0.0
  %1418 = vmatprep.subr.mxu0 0.0
  %1419 = vmatpush1.msra.mxu0 0.0
  %1420 = vmatprep.subr.mxu0 0.0
  %1421 = vmatpush1.msra.mxu0 0.0
  %1422 = vmatprep.subr.mxu0 0.0
  %1423 = vmatpush1.msra.mxu0 0.0
  %1424 = vmatprep.subr.mxu0 0.0
  %1425 = vmatpush1.msra.mxu0 0.0
  %1426 = vmatprep.subr.mxu0 0.0
  %1427 = vmatpush1.msra.mxu0 0.0
  %1428 = vmatprep.subr.mxu0 0.0
  %1429 = vmatpush1.msra.mxu0 0.0
  %1430 = vmatprep.subr.mxu0 0.0
  %1431 = vmatpush1.msra.mxu0 0.0
  %1432 = vmatprep.subr.mxu0 0.0
  %1433 = vmatpush1.msra.mxu0 0.0
  %1434 = vmatprep.subr.mxu0 0.0
  %1435 = vmatpush1.msra.mxu0 0.0
  %1436 = vmatprep.subr.mxu0 0.0
  %1437 = vmatpush1.msra.mxu0 0.0
  %1438 = vmatprep.subr.mxu0 0.0
  %1439 = vmatpush1.msra.mxu0 0.0
  %1440 = vmatprep.mubr.f32.mxu0 0.0
  %1441 = vmatmul.mubr.f32.gmra.mrb[0].mxu0 %v1374
  %v1442 = vpop.f32.mrb[0].mxu0
  %v1443 = vadd.f32 0.0, %v1442
  %v1444 = vpop.f32.mrb[0].mxu0
  %1445 = vdwg.mxu0
  %v1446 = vadd.f32 %v178, %v1443
  %v1447 = vxor.u32 %v1446, 2147483648
  %v1448 = vmul.f32 %v1447, 1.442695
  %v1449 = vpow.pop %v1448
  %v1450 = vadd.f32 %v1449, 1.0
  %v1451 = vrcp.pop %v1450
  %v1452 = vmul.f32 1.0, %v1451
  %v1453 = vtanh.pop %v1446
  %v1454 = vmul.f32 %v1452, %v1194
  %1456 = vrot.lane.b32.xlu0 %v1453, 64
  %v1457 = vpop.permute.xlu0 %1456
  %v1459 = vmul.f32 %v1452, %v1457
  %1461 = vrot.lane.b32.xlu0 %v1459, 32
  %v1462 = vpop.permute.xlu0 %1461
  %v1464 = vadd.f32 %v1454, %v1462
  %v1465 = vtanh.pop %v1464
  %1467 = vrot.lane.b32.xlu0 %v1465, 64
  %v1468 = vpop.permute.xlu0 %1467
  %v1470 = vmul.f32 %v1452, %v1468
  %1471 = vmatprep.subr.mxu0 0.0
  %1472 = vmatpush1.msra.mxu0 %v38
  %1473 = vmatprep.subr.mxu0 0.0
  %1474 = vmatpush1.msra.mxu0 %v39
  %1475 = vmatprep.subr.mxu0 0.0
  %1476 = vmatpush1.msra.mxu0 %v40
  %1477 = vmatprep.subr.mxu0 0.0
  %1478 = vmatpush1.msra.mxu0 %v41
  %1479 = vmatprep.subr.mxu0 0.0
  %1480 = vmatpush1.msra.mxu0 0.0
  %1481 = vmatprep.subr.mxu0 0.0
  %1482 = vmatpush1.msra.mxu0 0.0
  %1483 = vmatprep.subr.mxu0 0.0
  %1484 = vmatpush1.msra.mxu0 0.0
  %1485 = vmatprep.subr.mxu0 0.0
  %1486 = vmatpush1.msra.mxu0 0.0
  %1487 = vmatprep.subr.mxu0 0.0
  %1488 = vmatpush1.msra.mxu0 0.0
  %1489 = vmatprep.subr.mxu0 0.0
  %1490 = vmatpush1.msra.mxu0 0.0
  %1491 = vmatprep.subr.mxu0 0.0
  %1492 = vmatpush1.msra.mxu0 0.0
  %1493 = vmatprep.subr.mxu0 0.0
  %1494 = vmatpush1.msra.mxu0 0.0
  %1495 = vmatprep.subr.mxu0 0.0
  %1496 = vmatpush1.msra.mxu0 0.0
  %1497 = vmatprep.subr.mxu0 0.0
  %1498 = vmatpush1.msra.mxu0 0.0
  %1499 = vmatprep.subr.mxu0 0.0
  %1500 = vmatpush1.msra.mxu0 0.0
  %1501 = vmatprep.subr.mxu0 0.0
  %1502 = vmatpush1.msra.mxu0 0.0
  %1503 = vmatprep.subr.mxu0 0.0
  %1504 = vmatpush1.msra.mxu0 0.0
  %1505 = vmatprep.subr.mxu0 0.0
  %1506 = vmatpush1.msra.mxu0 0.0
  %1507 = vmatprep.subr.mxu0 0.0
  %1508 = vmatpush1.msra.mxu0 0.0
  %1509 = vmatprep.subr.mxu0 0.0
  %1510 = vmatpush1.msra.mxu0 0.0
  %1511 = vmatprep.subr.mxu0 0.0
  %1512 = vmatpush1.msra.mxu0 0.0
  %1513 = vmatprep.subr.mxu0 0.0
  %1514 = vmatpush1.msra.mxu0 0.0
  %1515 = vmatprep.subr.mxu0 0.0
  %1516 = vmatpush1.msra.mxu0 0.0
  %1517 = vmatprep.subr.mxu0 0.0
  %1518 = vmatpush1.msra.mxu0 0.0
  %1519 = vmatprep.subr.mxu0 0.0
  %1520 = vmatpush1.msra.mxu0 0.0
  %1521 = vmatprep.subr.mxu0 0.0
  %1522 = vmatpush1.msra.mxu0 0.0
  %1523 = vmatprep.subr.mxu0 0.0
  %1524 = vmatpush1.msra.mxu0 0.0
  %1525 = vmatprep.subr.mxu0 0.0
  %1526 = vmatpush1.msra.mxu0 0.0
  %1527 = vmatprep.subr.mxu0 0.0
  %1528 = vmatpush1.msra.mxu0 0.0
  %1529 = vmatprep.subr.mxu0 0.0
  %1530 = vmatpush1.msra.mxu0 0.0
  %1531 = vmatprep.subr.mxu0 0.0
  %1532 = vmatpush1.msra.mxu0 0.0
  %1533 = vmatprep.subr.mxu0 0.0
  %1534 = vmatpush1.msra.mxu0 0.0
  %1535 = vmatprep.mubr.f32.mxu0 0.0
  %1536 = vmatmul.mubr.f32.gmra.mrb[0].mxu0 %v1374
  %v1537 = vpop.f32.mrb[0].mxu0
  %v1538 = vadd.f32 %v394, %v1537
  %v1539 = vpop.f32.mrb[0].mxu0
  %1540 = vdwg.mxu0
  %1542 = vrot.lane.b32.xlu0 %v1370, 32
  %v1543 = vpop.permute.xlu0 %1542
  %v1544 = vsel %vm191, %v1543, 0
  %1546 = vmatprep.subr.mxu0 0.0
  %1547 = vmatpush1.msra.mxu0 %v31
  %1548 = vmatprep.subr.mxu0 0.0
  %1549 = vmatpush1.msra.mxu0 %v32
  %1550 = vmatprep.subr.mxu0 0.0
  %1551 = vmatpush1.msra.mxu0 %v33
  %1552 = vmatprep.subr.mxu0 0.0
  %1553 = vmatpush1.msra.mxu0 %v34
  %1554 = vmatprep.subr.mxu0 0.0
  %1555 = vmatpush1.msra.mxu0 0.0
  %1556 = vmatprep.subr.mxu0 0.0
  %1557 = vmatpush1.msra.mxu0 0.0
  %1558 = vmatprep.subr.mxu0 0.0
  %1559 = vmatpush1.msra.mxu0 0.0
  %1560 = vmatprep.subr.mxu0 0.0
  %1561 = vmatpush1.msra.mxu0 0.0
  %1562 = vmatprep.subr.mxu0 0.0
  %1563 = vmatpush1.msra.mxu0 0.0
  %1564 = vmatprep.subr.mxu0 0.0
  %1565 = vmatpush1.msra.mxu0 0.0
  %1566 = vmatprep.subr.mxu0 0.0
  %1567 = vmatpush1.msra.mxu0 0.0
  %1568 = vmatprep.subr.mxu0 0.0
  %1569 = vmatpush1.msra.mxu0 0.0
  %1570 = vmatprep.subr.mxu0 0.0
  %1571 = vmatpush1.msra.mxu0 0.0
  %1572 = vmatprep.subr.mxu0 0.0
  %1573 = vmatpush1.msra.mxu0 0.0
  %1574 = vmatprep.subr.mxu0 0.0
  %1575 = vmatpush1.msra.mxu0 0.0
  %1576 = vmatprep.subr.mxu0 0.0
  %1577 = vmatpush1.msra.mxu0 0.0
  %1578 = vmatprep.subr.mxu0 0.0
  %1579 = vmatpush1.msra.mxu0 0.0
  %1580 = vmatprep.subr.mxu0 0.0
  %1581 = vmatpush1.msra.mxu0 0.0
  %1582 = vmatprep.subr.mxu0 0.0
  %1583 = vmatpush1.msra.mxu0 0.0
  %1584 = vmatprep.subr.mxu0 0.0
  %1585 = vmatpush1.msra.mxu0 0.0
  %1586 = vmatprep.subr.mxu0 0.0
  %1587 = vmatpush1.msra.mxu0 0.0
  %1588 = vmatprep.subr.mxu0 0.0
  %1589 = vmatpush1.msra.mxu0 0.0
  %1590 = vmatprep.subr.mxu0 0.0
  %1591 = vmatpush1.msra.mxu0 0.0
  %1592 = vmatprep.subr.mxu0 0.0
  %1593 = vmatpush1.msra.mxu0 0.0
  %1594 = vmatprep.subr.mxu0 0.0
  %1595 = vmatpush1.msra.mxu0 0.0
  %1596 = vmatprep.subr.mxu0 0.0
  %1597 = vmatpush1.msra.mxu0 0.0
  %1598 = vmatprep.subr.mxu0 0.0
  %1599 = vmatpush1.msra.mxu0 0.0
  %1600 = vmatprep.subr.mxu0 0.0
  %1601 = vmatpush1.msra.mxu0 0.0
  %1602 = vmatprep.subr.mxu0 0.0
  %1603 = vmatpush1.msra.mxu0 0.0
  %1604 = vmatprep.subr.mxu0 0.0
  %1605 = vmatpush1.msra.mxu0 0.0
  %1606 = vmatprep.subr.mxu0 0.0
  %1607 = vmatpush1.msra.mxu0 0.0
  %1608 = vmatprep.subr.mxu0 0.0
  %1609 = vmatpush1.msra.mxu0 0.0
  %1610 = vmatprep.mubr.f32.mxu0 0.0
  %1611 = vmatmul.mubr.f32.gmra.mrb[0].mxu0 %v1544
  %v1612 = vpop.f32.mrb[0].mxu0
  %v1613 = vadd.f32 0.0, %v1612
  %v1614 = vpop.f32.mrb[0].mxu0
  %1615 = vdwg.mxu0
  %v1616 = vadd.f32 %v1538, %v1613
  %v1617 = vxor.u32 %v1616, 2147483648
  %v1618 = vmul.f32 %v1617, 1.442695
  %v1619 = vpow.pop %v1618
  %v1620 = vadd.f32 %v1619, 1.0
  %v1621 = vrcp.pop %v1620
  %v1622 = vmul.f32 1.0, %v1621
  %v1623 = vtanh.pop %v1616
  %v1624 = vmul.f32 %v1622, %v1364
  %1626 = vrot.lane.b32.xlu0 %v1623, 64
  %v1627 = vpop.permute.xlu0 %1626
  %v1629 = vmul.f32 %v1622, %v1627
  %1631 = vrot.lane.b32.xlu0 %v1629, 32
  %v1632 = vpop.permute.xlu0 %1631
  %v1634 = vadd.f32 %v1624, %v1632
  %v1635 = vtanh.pop %v1634
  %1637 = vrot.lane.b32.xlu0 %v1635, 64
  %v1638 = vpop.permute.xlu0 %1637
  %v1640 = vmul.f32 %v1622, %v1638
  %1642 = vrot.lane.b32.xlu0 %v1470, 32
  %v1643 = vpop.permute.xlu0 %1642
  %v1644 = vsel %vm191, %v1643, 0
  %1646 = vmatprep.subr.mxu0 0.0
  %1647 = vmatpush1.msra.mxu0 %v26
  %1648 = vmatprep.subr.mxu0 0.0
  %1649 = vmatpush1.msra.mxu0 %v27
  %1650 = vmatprep.subr.mxu0 0.0
  %1651 = vmatpush1.msra.mxu0 %v28
  %1652 = vmatprep.subr.mxu0 0.0
  %1653 = vmatpush1.msra.mxu0 %v29
  %1654 = vmatprep.subr.mxu0 0.0
  %1655 = vmatpush1.msra.mxu0 0.0
  %1656 = vmatprep.subr.mxu0 0.0
  %1657 = vmatpush1.msra.mxu0 0.0
  %1658 = vmatprep.subr.mxu0 0.0
  %1659 = vmatpush1.msra.mxu0 0.0
  %1660 = vmatprep.subr.mxu0 0.0
  %1661 = vmatpush1.msra.mxu0 0.0
  %1662 = vmatprep.subr.mxu0 0.0
  %1663 = vmatpush1.msra.mxu0 0.0
  %1664 = vmatprep.subr.mxu0 0.0
  %1665 = vmatpush1.msra.mxu0 0.0
  %1666 = vmatprep.subr.mxu0 0.0
  %1667 = vmatpush1.msra.mxu0 0.0
  %1668 = vmatprep.subr.mxu0 0.0
  %1669 = vmatpush1.msra.mxu0 0.0
  %1670 = vmatprep.subr.mxu0 0.0
  %1671 = vmatpush1.msra.mxu0 0.0
  %1672 = vmatprep.subr.mxu0 0.0
  %1673 = vmatpush1.msra.mxu0 0.0
  %1674 = vmatprep.subr.mxu0 0.0
  %1675 = vmatpush1.msra.mxu0 0.0
  %1676 = vmatprep.subr.mxu0 0.0
  %1677 = vmatpush1.msra.mxu0 0.0
  %1678 = vmatprep.subr.mxu0 0.0
  %1679 = vmatpush1.msra.mxu0 0.0
  %1680 = vmatprep.subr.mxu0 0.0
  %1681 = vmatpush1.msra.mxu0 0.0
  %1682 = vmatprep.subr.mxu0 0.0
  %1683 = vmatpush1.msra.mxu0 0.0
  %1684 = vmatprep.subr.mxu0 0.0
  %1685 = vmatpush1.msra.mxu0 0.0
  %1686 = vmatprep.subr.mxu0 0.0
  %1687 = vmatpush1.msra.mxu0 0.0
  %1688 = vmatprep.subr.mxu0 0.0
  %1689 = vmatpush1.msra.mxu0 0.0
  %1690 = vmatprep.subr.mxu0 0.0
  %1691 = vmatpush1.msra.mxu0 0.0
  %1692 = vmatprep.subr.mxu0 0.0
  %1693 = vmatpush1.msra.mxu0 0.0
  %1694 = vmatprep.subr.mxu0 0.0
  %1695 = vmatpush1.msra.mxu0 0.0
  %1696 = vmatprep.subr.mxu0 0.0
  %1697 = vmatpush1.msra.mxu0 0.0
  %1698 = vmatprep.subr.mxu0 0.0
  %1699 = vmatpush1.msra.mxu0 0.0
  %1700 = vmatprep.subr.mxu0 0.0
  %1701 = vmatpush1.msra.mxu0 0.0
  %1702 = vmatprep.subr.mxu0 0.0
  %1703 = vmatpush1.msra.mxu0 0.0
  %1704 = vmatprep.subr.mxu0 0.0
  %1705 = vmatpush1.msra.mxu0 0.0
  %1706 = vmatprep.subr.mxu0 0.0
  %1707 = vmatpush1.msra.mxu0 0.0
  %1708 = vmatprep.subr.mxu0 0.0
  %1709 = vmatpush1.msra.mxu0 0.0
  %1710 = vmatprep.mubr.f32.mxu0 0.0
  %1711 = vmatmul.mubr.f32.gmra.mrb[0].mxu0 %v1644
  %v1712 = vpop.f32.mrb[0].mxu0
  %v1713 = vadd.f32 0.0, %v1712
  %v1714 = vpop.f32.mrb[0].mxu0
  %1715 = vdwg.mxu0
  %v1716 = vadd.f32 %v183, %v1713
  %v1717 = vxor.u32 %v1716, 2147483648
  %v1718 = vmul.f32 %v1717, 1.442695
  %v1719 = vpow.pop %v1718
  %v1720 = vadd.f32 %v1719, 1.0
  %v1721 = vrcp.pop %v1720
  %v1722 = vmul.f32 1.0, %v1721
  %v1723 = vtanh.pop %v1716
  %v1724 = vmul.f32 %v1722, %v1464
  %1726 = vrot.lane.b32.xlu0 %v1723, 64
  %v1727 = vpop.permute.xlu0 %1726
  %v1729 = vmul.f32 %v1722, %v1727
  %1731 = vrot.lane.b32.xlu0 %v1729, 32
  %v1732 = vpop.permute.xlu0 %1731
  %v1734 = vadd.f32 %v1724, %v1732
  %v1735 = vtanh.pop %v1734
  %1737 = vrot.lane.b32.xlu0 %v1735, 64
  %v1738 = vpop.permute.xlu0 %1737
  %v1740 = vmul.f32 %v1722, %v1738
  %1741 = vmatprep.subr.mxu0 0.0
  %1742 = vmatpush1.msra.mxu0 %v38
  %1743 = vmatprep.subr.mxu0 0.0
  %1744 = vmatpush1.msra.mxu0 %v39
  %1745 = vmatprep.subr.mxu0 0.0
  %1746 = vmatpush1.msra.mxu0 %v40
  %1747 = vmatprep.subr.mxu0 0.0
  %1748 = vmatpush1.msra.mxu0 %v41
  %1749 = vmatprep.subr.mxu0 0.0
  %1750 = vmatpush1.msra.mxu0 0.0
  %1751 = vmatprep.subr.mxu0 0.0
  %1752 = vmatpush1.msra.mxu0 0.0
  %1753 = vmatprep.subr.mxu0 0.0
  %1754 = vmatpush1.msra.mxu0 0.0
  %1755 = vmatprep.subr.mxu0 0.0
  %1756 = vmatpush1.msra.mxu0 0.0
  %1757 = vmatprep.subr.mxu0 0.0
  %1758 = vmatpush1.msra.mxu0 0.0
  %1759 = vmatprep.subr.mxu0 0.0
  %1760 = vmatpush1.msra.mxu0 0.0
  %1761 = vmatprep.subr.mxu0 0.0
  %1762 = vmatpush1.msra.mxu0 0.0
  %1763 = vmatprep.subr.mxu0 0.0
  %1764 = vmatpush1.msra.mxu0 0.0
  %1765 = vmatprep.subr.mxu0 0.0
  %1766 = vmatpush1.msra.mxu0 0.0
  %1767 = vmatprep.subr.mxu0 0.0
  %1768 = vmatpush1.msra.mxu0 0.0
  %1769 = vmatprep.subr.mxu0 0.0
  %1770 = vmatpush1.msra.mxu0 0.0
  %1771 = vmatprep.subr.mxu0 0.0
  %1772 = vmatpush1.msra.mxu0 0.0
  %1773 = vmatprep.subr.mxu0 0.0
  %1774 = vmatpush1.msra.mxu0 0.0
  %1775 = vmatprep.subr.mxu0 0.0
  %1776 = vmatpush1.msra.mxu0 0.0
  %1777 = vmatprep.subr.mxu0 0.0
  %1778 = vmatpush1.msra.mxu0 0.0
  %1779 = vmatprep.subr.mxu0 0.0
  %1780 = vmatpush1.msra.mxu0 0.0
  %1781 = vmatprep.subr.mxu0 0.0
  %1782 = vmatpush1.msra.mxu0 0.0
  %1783 = vmatprep.subr.mxu0 0.0
  %1784 = vmatpush1.msra.mxu0 0.0
  %1785 = vmatprep.subr.mxu0 0.0
  %1786 = vmatpush1.msra.mxu0 0.0
  %1787 = vmatprep.subr.mxu0 0.0
  %1788 = vmatpush1.msra.mxu0 0.0
  %1789 = vmatprep.subr.mxu0 0.0
  %1790 = vmatpush1.msra.mxu0 0.0
  %1791 = vmatprep.subr.mxu0 0.0
  %1792 = vmatpush1.msra.mxu0 0.0
  %1793 = vmatprep.subr.mxu0 0.0
  %1794 = vmatpush1.msra.mxu0 0.0
  %1795 = vmatprep.subr.mxu0 0.0
  %1796 = vmatpush1.msra.mxu0 0.0
  %1797 = vmatprep.subr.mxu0 0.0
  %1798 = vmatpush1.msra.mxu0 0.0
  %1799 = vmatprep.subr.mxu0 0.0
  %1800 = vmatpush1.msra.mxu0 0.0
  %1801 = vmatprep.subr.mxu0 0.0
  %1802 = vmatpush1.msra.mxu0 0.0
  %1803 = vmatprep.subr.mxu0 0.0
  %1804 = vmatpush1.msra.mxu0 0.0
  %1805 = vmatprep.mubr.f32.mxu0 0.0
  %1806 = vmatmul.mubr.f32.gmra.mrb[0].mxu0 %v1644
  %v1807 = vpop.f32.mrb[0].mxu0
  %v1808 = vadd.f32 %v394, %v1807
  %v1809 = vpop.f32.mrb[0].mxu0
  %1810 = vdwg.mxu0
  %1812 = vrot.lane.b32.xlu0 %v1640, 32
  %v1813 = vpop.permute.xlu0 %1812
  %v1814 = vsel %vm191, %v1813, 0
  %1816 = vmatprep.subr.mxu0 0.0
  %1817 = vmatpush1.msra.mxu0 %v31
  %1818 = vmatprep.subr.mxu0 0.0
  %1819 = vmatpush1.msra.mxu0 %v32
  %1820 = vmatprep.subr.mxu0 0.0
  %1821 = vmatpush1.msra.mxu0 %v33
  %1822 = vmatprep.subr.mxu0 0.0
  %1823 = vmatpush1.msra.mxu0 %v34
  %1824 = vmatprep.subr.mxu0 0.0
  %1825 = vmatpush1.msra.mxu0 0.0
  %1826 = vmatprep.subr.mxu0 0.0
  %1827 = vmatpush1.msra.mxu0 0.0
  %1828 = vmatprep.subr.mxu0 0.0
  %1829 = vmatpush1.msra.mxu0 0.0
  %1830 = vmatprep.subr.mxu0 0.0
  %1831 = vmatpush1.msra.mxu0 0.0
  %1832 = vmatprep.subr.mxu0 0.0
  %1833 = vmatpush1.msra.mxu0 0.0
  %1834 = vmatprep.subr.mxu0 0.0
  %1835 = vmatpush1.msra.mxu0 0.0
  %1836 = vmatprep.subr.mxu0 0.0
  %1837 = vmatpush1.msra.mxu0 0.0
  %1838 = vmatprep.subr.mxu0 0.0
  %1839 = vmatpush1.msra.mxu0 0.0
  %1840 = vmatprep.subr.mxu0 0.0
  %1841 = vmatpush1.msra.mxu0 0.0
  %1842 = vmatprep.subr.mxu0 0.0
  %1843 = vmatpush1.msra.mxu0 0.0
  %1844 = vmatprep.subr.mxu0 0.0
  %1845 = vmatpush1.msra.mxu0 0.0
  %1846 = vmatprep.subr.mxu0 0.0
  %1847 = vmatpush1.msra.mxu0 0.0
  %1848 = vmatprep.subr.mxu0 0.0
  %1849 = vmatpush1.msra.mxu0 0.0
  %1850 = vmatprep.subr.mxu0 0.0
  %1851 = vmatpush1.msra.mxu0 0.0
  %1852 = vmatprep.subr.mxu0 0.0
  %1853 = vmatpush1.msra.mxu0 0.0
  %1854 = vmatprep.subr.mxu0 0.0
  %1855 = vmatpush1.msra.mxu0 0.0
  %1856 = vmatprep.subr.mxu0 0.0
  %1857 = vmatpush1.msra.mxu0 0.0
  %1858 = vmatprep.subr.mxu0 0.0
  %1859 = vmatpush1.msra.mxu0 0.0
  %1860 = vmatprep.subr.mxu0 0.0
  %1861 = vmatpush1.msra.mxu0 0.0
  %1862 = vmatprep.subr.mxu0 0.0
  %1863 = vmatpush1.msra.mxu0 0.0
  %1864 = vmatprep.subr.mxu0 0.0
  %1865 = vmatpush1.msra.mxu0 0.0
  %1866 = vmatprep.subr.mxu0 0.0
  %1867 = vmatpush1.msra.mxu0 0.0
  %1868 = vmatprep.subr.mxu0 0.0
  %1869 = vmatpush1.msra.mxu0 0.0
  %1870 = vmatprep.subr.mxu0 0.0
  %1871 = vmatpush1.msra.mxu0 0.0
  %1872 = vmatprep.subr.mxu0 0.0
  %1873 = vmatpush1.msra.mxu0 0.0
  %1874 = vmatprep.subr.mxu0 0.0
  %1875 = vmatpush1.msra.mxu0 0.0
  %1876 = vmatprep.subr.mxu0 0.0
  %1877 = vmatpush1.msra.mxu0 0.0
  %1878 = vmatprep.subr.mxu0 0.0
  %1879 = vmatpush1.msra.mxu0 0.0
  %1880 = vmatprep.mubr.f32.mxu0 0.0
  %1881 = vmatmul.mubr.f32.gmra.mrb[0].mxu0 %v1814
  %v1882 = vpop.f32.mrb[0].mxu0
  %v1883 = vadd.f32 0.0, %v1882
  %v1884 = vpop.f32.mrb[0].mxu0
  %1885 = vdwg.mxu0
  %v1886 = vadd.f32 %v1808, %v1883
  %v1887 = vxor.u32 %v1886, 2147483648
  %v1888 = vmul.f32 %v1887, 1.442695
  %v1889 = vpow.pop %v1888
  %v1890 = vadd.f32 %v1889, 1.0
  %v1891 = vrcp.pop %v1890
  %v1892 = vmul.f32 1.0, %v1891
  %v1893 = vtanh.pop %v1886
  %v1894 = vmul.f32 %v1892, %v1634
  %1896 = vrot.lane.b32.xlu0 %v1893, 64
  %v1897 = vpop.permute.xlu0 %1896
  %v1899 = vmul.f32 %v1892, %v1897
  %1901 = vrot.lane.b32.xlu0 %v1899, 32
  %v1902 = vpop.permute.xlu0 %1901
  %v1904 = vadd.f32 %v1894, %v1902
  %v1905 = vtanh.pop %v1904
  %1907 = vrot.lane.b32.xlu0 %v1905, 64
  %v1908 = vpop.permute.xlu0 %1907
  %v1910 = vmul.f32 %v1892, %v1908
  %1912 = vrot.lane.b32.xlu0 %v1740, 32
  %v1913 = vpop.permute.xlu0 %1912
  %v1914 = vsel %vm191, %v1913, 0
  %1916 = vmatprep.subr.mxu0 0.0
  %1917 = vmatpush1.msra.mxu0 %v26
  %1918 = vmatprep.subr.mxu0 0.0
  %1919 = vmatpush1.msra.mxu0 %v27
  %1920 = vmatprep.subr.mxu0 0.0
  %1921 = vmatpush1.msra.mxu0 %v28
  %1922 = vmatprep.subr.mxu0 0.0
  %1923 = vmatpush1.msra.mxu0 %v29
  %1924 = vmatprep.subr.mxu0 0.0
  %1925 = vmatpush1.msra.mxu0 0.0
  %1926 = vmatprep.subr.mxu0 0.0
  %1927 = vmatpush1.msra.mxu0 0.0
  %1928 = vmatprep.subr.mxu0 0.0
  %1929 = vmatpush1.msra.mxu0 0.0
  %1930 = vmatprep.subr.mxu0 0.0
  %1931 = vmatpush1.msra.mxu0 0.0
  %1932 = vmatprep.subr.mxu0 0.0
  %1933 = vmatpush1.msra.mxu0 0.0
  %1934 = vmatprep.subr.mxu0 0.0
  %1935 = vmatpush1.msra.mxu0 0.0
  %1936 = vmatprep.subr.mxu0 0.0
  %1937 = vmatpush1.msra.mxu0 0.0
  %1938 = vmatprep.subr.mxu0 0.0
  %1939 = vmatpush1.msra.mxu0 0.0
  %1940 = vmatprep.subr.mxu0 0.0
  %1941 = vmatpush1.msra.mxu0 0.0
  %1942 = vmatprep.subr.mxu0 0.0
  %1943 = vmatpush1.msra.mxu0 0.0
  %1944 = vmatprep.subr.mxu0 0.0
  %1945 = vmatpush1.msra.mxu0 0.0
  %1946 = vmatprep.subr.mxu0 0.0
  %1947 = vmatpush1.msra.mxu0 0.0
  %1948 = vmatprep.subr.mxu0 0.0
  %1949 = vmatpush1.msra.mxu0 0.0
  %1950 = vmatprep.subr.mxu0 0.0
  %1951 = vmatpush1.msra.mxu0 0.0
  %1952 = vmatprep.subr.mxu0 0.0
  %1953 = vmatpush1.msra.mxu0 0.0
  %1954 = vmatprep.subr.mxu0 0.0
  %1955 = vmatpush1.msra.mxu0 0.0
  %1956 = vmatprep.subr.mxu0 0.0
  %1957 = vmatpush1.msra.mxu0 0.0
  %1958 = vmatprep.subr.mxu0 0.0
  %1959 = vmatpush1.msra.mxu0 0.0
  %1960 = vmatprep.subr.mxu0 0.0
  %1961 = vmatpush1.msra.mxu0 0.0
  %1962 = vmatprep.subr.mxu0 0.0
  %1963 = vmatpush1.msra.mxu0 0.0
  %1964 = vmatprep.subr.mxu0 0.0
  %1965 = vmatpush1.msra.mxu0 0.0
  %1966 = vmatprep.subr.mxu0 0.0
  %1967 = vmatpush1.msra.mxu0 0.0
  %1968 = vmatprep.subr.mxu0 0.0
  %1969 = vmatpush1.msra.mxu0 0.0
  %1970 = vmatprep.subr.mxu0 0.0
  %1971 = vmatpush1.msra.mxu0 0.0
  %1972 = vmatprep.subr.mxu0 0.0
  %1973 = vmatpush1.msra.mxu0 0.0
  %1974 = vmatprep.subr.mxu0 0.0
  %1975 = vmatpush1.msra.mxu0 0.0
  %1976 = vmatprep.subr.mxu0 0.0
  %1977 = vmatpush1.msra.mxu0 0.0
  %1978 = vmatprep.subr.mxu0 0.0
  %1979 = vmatpush1.msra.mxu0 0.0
  %1980 = vmatprep.mubr.f32.mxu0 0.0
  %1981 = vmatmul.mubr.f32.gmra.mrb[0].mxu0 %v1914
  %v1982 = vpop.f32.mrb[0].mxu0
  %v1983 = vadd.f32 0.0, %v1982
  %v1984 = vpop.f32.mrb[0].mxu0
  %1985 = vdwg.mxu0
  %v1986 = vadd.f32 %v188, %v1983
  %v1987 = vxor.u32 %v1986, 2147483648
  %v1988 = vmul.f32 %v1987, 1.442695
  %v1989 = vpow.pop %v1988
  %v1990 = vadd.f32 %v1989, 1.0
  %v1991 = vrcp.pop %v1990
  %v1992 = vmul.f32 1.0, %v1991
  %v1993 = vtanh.pop %v1986
  %v1994 = vmul.f32 %v1992, %v1734
  %1996 = vrot.lane.b32.xlu0 %v1993, 64
  %v1997 = vpop.permute.xlu0 %1996
  %v1999 = vmul.f32 %v1992, %v1997
  %2001 = vrot.lane.b32.xlu0 %v1999, 32
  %v2002 = vpop.permute.xlu0 %2001
  %v2004 = vadd.f32 %v1994, %v2002
  %v2005 = vtanh.pop %v2004
  %2007 = vrot.lane.b32.xlu0 %v2005, 64
  %v2008 = vpop.permute.xlu0 %2007
  %v2010 = vmul.f32 %v1992, %v2008
  %2011 = vmatprep.subr.mxu0 0.0
  %2012 = vmatpush1.msra.mxu0 %v38
  %2013 = vmatprep.subr.mxu0 0.0
  %2014 = vmatpush1.msra.mxu0 %v39
  %2015 = vmatprep.subr.mxu0 0.0
  %2016 = vmatpush1.msra.mxu0 %v40
  %2017 = vmatprep.subr.mxu0 0.0
  %2018 = vmatpush1.msra.mxu0 %v41
  %2019 = vmatprep.subr.mxu0 0.0
  %2020 = vmatpush1.msra.mxu0 0.0
  %2021 = vmatprep.subr.mxu0 0.0
  %2022 = vmatpush1.msra.mxu0 0.0
  %2023 = vmatprep.subr.mxu0 0.0
  %2024 = vmatpush1.msra.mxu0 0.0
  %2025 = vmatprep.subr.mxu0 0.0
  %2026 = vmatpush1.msra.mxu0 0.0
  %2027 = vmatprep.subr.mxu0 0.0
  %2028 = vmatpush1.msra.mxu0 0.0
  %2029 = vmatprep.subr.mxu0 0.0
  %2030 = vmatpush1.msra.mxu0 0.0
  %2031 = vmatprep.subr.mxu0 0.0
  %2032 = vmatpush1.msra.mxu0 0.0
  %2033 = vmatprep.subr.mxu0 0.0
  %2034 = vmatpush1.msra.mxu0 0.0
  %2035 = vmatprep.subr.mxu0 0.0
  %2036 = vmatpush1.msra.mxu0 0.0
  %2037 = vmatprep.subr.mxu0 0.0
  %2038 = vmatpush1.msra.mxu0 0.0
  %2039 = vmatprep.subr.mxu0 0.0
  %2040 = vmatpush1.msra.mxu0 0.0
  %2041 = vmatprep.subr.mxu0 0.0
  %2042 = vmatpush1.msra.mxu0 0.0
  %2043 = vmatprep.subr.mxu0 0.0
  %2044 = vmatpush1.msra.mxu0 0.0
  %2045 = vmatprep.subr.mxu0 0.0
  %2046 = vmatpush1.msra.mxu0 0.0
  %2047 = vmatprep.subr.mxu0 0.0
  %2048 = vmatpush1.msra.mxu0 0.0
  %2049 = vmatprep.subr.mxu0 0.0
  %2050 = vmatpush1.msra.mxu0 0.0
  %2051 = vmatprep.subr.mxu0 0.0
  %2052 = vmatpush1.msra.mxu0 0.0
  %2053 = vmatprep.subr.mxu0 0.0
  %2054 = vmatpush1.msra.mxu0 0.0
  %2055 = vmatprep.subr.mxu0 0.0
  %2056 = vmatpush1.msra.mxu0 0.0
  %2057 = vmatprep.subr.mxu0 0.0
  %2058 = vmatpush1.msra.mxu0 0.0
  %2059 = vmatprep.subr.mxu0 0.0
  %2060 = vmatpush1.msra.mxu0 0.0
  %2061 = vmatprep.subr.mxu0 0.0
  %2062 = vmatpush1.msra.mxu0 0.0
  %2063 = vmatprep.subr.mxu0 0.0
  %2064 = vmatpush1.msra.mxu0 0.0
  %2065 = vmatprep.subr.mxu0 0.0
  %2066 = vmatpush1.msra.mxu0 0.0
  %2067 = vmatprep.subr.mxu0 0.0
  %2068 = vmatpush1.msra.mxu0 0.0
  %2069 = vmatprep.subr.mxu0 0.0
  %2070 = vmatpush1.msra.mxu0 0.0
  %2071 = vmatprep.subr.mxu0 0.0
  %2072 = vmatpush1.msra.mxu0 0.0
  %2073 = vmatprep.subr.mxu0 0.0
  %2074 = vmatpush1.msra.mxu0 0.0
  %2075 = vmatprep.mubr.f32.mxu0 0.0
  %2076 = vmatmul.mubr.f32.gmra.mrb[0].mxu0 %v1914
  %v2077 = vpop.f32.mrb[0].mxu0
  %v2078 = vadd.f32 %v394, %v2077
  %v2079 = vpop.f32.mrb[0].mxu0
  %2080 = vdwg.mxu0
  %2082 = vrot.lane.b32.xlu0 %v1910, 32
  %v2083 = vpop.permute.xlu0 %2082
  %v2084 = vsel %vm191, %v2083, 0
  %2086 = vmatprep.subr.mxu0 0.0
  %2087 = vmatpush1.msra.mxu0 %v31
  %2088 = vmatprep.subr.mxu0 0.0
  %2089 = vmatpush1.msra.mxu0 %v32
  %2090 = vmatprep.subr.mxu0 0.0
  %2091 = vmatpush1.msra.mxu0 %v33
  %2092 = vmatprep.subr.mxu0 0.0
  %2093 = vmatpush1.msra.mxu0 %v34
  %2094 = vmatprep.subr.mxu0 0.0
  %2095 = vmatpush1.msra.mxu0 0.0
  %2096 = vmatprep.subr.mxu0 0.0
  %2097 = vmatpush1.msra.mxu0 0.0
  %2098 = vmatprep.subr.mxu0 0.0
  %2099 = vmatpush1.msra.mxu0 0.0
  %2100 = vmatprep.subr.mxu0 0.0
  %2101 = vmatpush1.msra.mxu0 0.0
  %2102 = vmatprep.subr.mxu0 0.0
  %2103 = vmatpush1.msra.mxu0 0.0
  %2104 = vmatprep.subr.mxu0 0.0
  %2105 = vmatpush1.msra.mxu0 0.0
  %2106 = vmatprep.subr.mxu0 0.0
  %2107 = vmatpush1.msra.mxu0 0.0
  %2108 = vmatprep.subr.mxu0 0.0
  %2109 = vmatpush1.msra.mxu0 0.0
  %2110 = vmatprep.subr.mxu0 0.0
  %2111 = vmatpush1.msra.mxu0 0.0
  %2112 = vmatprep.subr.mxu0 0.0
  %2113 = vmatpush1.msra.mxu0 0.0
  %2114 = vmatprep.subr.mxu0 0.0
  %2115 = vmatpush1.msra.mxu0 0.0
  %2116 = vmatprep.subr.mxu0 0.0
  %2117 = vmatpush1.msra.mxu0 0.0
  %2118 = vmatprep.subr.mxu0 0.0
  %2119 = vmatpush1.msra.mxu0 0.0
  %2120 = vmatprep.subr.mxu0 0.0
  %2121 = vmatpush1.msra.mxu0 0.0
  %2122 = vmatprep.subr.mxu0 0.0
  %2123 = vmatpush1.msra.mxu0 0.0
  %2124 = vmatprep.subr.mxu0 0.0
  %2125 = vmatpush1.msra.mxu0 0.0
  %2126 = vmatprep.subr.mxu0 0.0
  %2127 = vmatpush1.msra.mxu0 0.0
  %2128 = vmatprep.subr.mxu0 0.0
  %2129 = vmatpush1.msra.mxu0 0.0
  %2130 = vmatprep.subr.mxu0 0.0
  %2131 = vmatpush1.msra.mxu0 0.0
  %2132 = vmatprep.subr.mxu0 0.0
  %2133 = vmatpush1.msra.mxu0 0.0
  %2134 = vmatprep.subr.mxu0 0.0
  %2135 = vmatpush1.msra.mxu0 0.0
  %2136 = vmatprep.subr.mxu0 0.0
  %2137 = vmatpush1.msra.mxu0 0.0
  %2138 = vmatprep.subr.mxu0 0.0
  %2139 = vmatpush1.msra.mxu0 0.0
  %2140 = vmatprep.subr.mxu0 0.0
  %2141 = vmatpush1.msra.mxu0 0.0
  %2142 = vmatprep.subr.mxu0 0.0
  %2143 = vmatpush1.msra.mxu0 0.0
  %2144 = vmatprep.subr.mxu0 0.0
  %2145 = vmatpush1.msra.mxu0 0.0
  %2146 = vmatprep.subr.mxu0 0.0
  %2147 = vmatpush1.msra.mxu0 0.0
  %2148 = vmatprep.subr.mxu0 0.0
  %2149 = vmatpush1.msra.mxu0 0.0
  %2150 = vmatprep.mubr.f32.mxu0 0.0
  %2151 = vmatmul.mubr.f32.gmra.mrb[0].mxu0 %v2084
  %v2152 = vpop.f32.mrb[0].mxu0
  %v2153 = vadd.f32 0.0, %v2152
  %v2154 = vpop.f32.mrb[0].mxu0
  %2155 = vdwg.mxu0
  %v2156 = vadd.f32 %v2078, %v2153
  %v2157 = vxor.u32 %v2156, 2147483648
  %v2158 = vmul.f32 %v2157, 1.442695
  %v2159 = vpow.pop %v2158
  %v2160 = vadd.f32 %v2159, 1.0
  %v2161 = vrcp.pop %v2160
  %v2162 = vmul.f32 1.0, %v2161
  %v2163 = vtanh.pop %v2156
  %v2164 = vmul.f32 %v2162, %v1904
  %2166 = vrot.lane.b32.xlu0 %v2163, 64
  %v2167 = vpop.permute.xlu0 %2166
  %v2169 = vmul.f32 %v2162, %v2167
  %2171 = vrot.lane.b32.xlu0 %v2169, 32
  %v2172 = vpop.permute.xlu0 %2171
  %v2174 = vadd.f32 %v2164, %v2172
  %v2175 = vtanh.pop %v2174
  %2177 = vrot.lane.b32.xlu0 %v2175, 64
  %v2178 = vpop.permute.xlu0 %2177
  %v2180 = vmul.f32 %v2162, %v2178
  %2182 = vrot.lane.b32.xlu0 %v2010, 32
  %v2183 = vpop.permute.xlu0 %2182
  %v2184 = vsel %vm191, %v2183, 0
  %2186 = vmatprep.subr.mxu0 0.0
  %2187 = vmatpush1.msra.mxu0 %v38
  %2188 = vmatprep.subr.mxu0 0.0
  %2189 = vmatpush1.msra.mxu0 %v39
  %2190 = vmatprep.subr.mxu0 0.0
  %2191 = vmatpush1.msra.mxu0 %v40
  %2192 = vmatprep.subr.mxu0 0.0
  %2193 = vmatpush1.msra.mxu0 %v41
  %2194 = vmatprep.subr.mxu0 0.0
  %2195 = vmatpush1.msra.mxu0 0.0
  %2196 = vmatprep.subr.mxu0 0.0
  %2197 = vmatpush1.msra.mxu0 0.0
  %2198 = vmatprep.subr.mxu0 0.0
  %2199 = vmatpush1.msra.mxu0 0.0
  %2200 = vmatprep.subr.mxu0 0.0
  %2201 = vmatpush1.msra.mxu0 0.0
  %2202 = vmatprep.subr.mxu0 0.0
  %2203 = vmatpush1.msra.mxu0 0.0
  %2204 = vmatprep.subr.mxu0 0.0
  %2205 = vmatpush1.msra.mxu0 0.0
  %2206 = vmatprep.subr.mxu0 0.0
  %2207 = vmatpush1.msra.mxu0 0.0
  %2208 = vmatprep.subr.mxu0 0.0
  %2209 = vmatpush1.msra.mxu0 0.0
  %2210 = vmatprep.subr.mxu0 0.0
  %2211 = vmatpush1.msra.mxu0 0.0
  %2212 = vmatprep.subr.mxu0 0.0
  %2213 = vmatpush1.msra.mxu0 0.0
  %2214 = vmatprep.subr.mxu0 0.0
  %2215 = vmatpush1.msra.mxu0 0.0
  %2216 = vmatprep.subr.mxu0 0.0
  %2217 = vmatpush1.msra.mxu0 0.0
  %2218 = vmatprep.subr.mxu0 0.0
  %2219 = vmatpush1.msra.mxu0 0.0
  %2220 = vmatprep.subr.mxu0 0.0
  %2221 = vmatpush1.msra.mxu0 0.0
  %2222 = vmatprep.subr.mxu0 0.0
  %2223 = vmatpush1.msra.mxu0 0.0
  %2224 = vmatprep.subr.mxu0 0.0
  %2225 = vmatpush1.msra.mxu0 0.0
  %2226 = vmatprep.subr.mxu0 0.0
  %2227 = vmatpush1.msra.mxu0 0.0
  %2228 = vmatprep.subr.mxu0 0.0
  %2229 = vmatpush1.msra.mxu0 0.0
  %2230 = vmatprep.subr.mxu0 0.0
  %2231 = vmatpush1.msra.mxu0 0.0
  %2232 = vmatprep.subr.mxu0 0.0
  %2233 = vmatpush1.msra.mxu0 0.0
  %2234 = vmatprep.subr.mxu0 0.0
  %2235 = vmatpush1.msra.mxu0 0.0
  %2236 = vmatprep.subr.mxu0 0.0
  %2237 = vmatpush1.msra.mxu0 0.0
  %2238 = vmatprep.subr.mxu0 0.0
  %2239 = vmatpush1.msra.mxu0 0.0
  %2240 = vmatprep.subr.mxu0 0.0
  %2241 = vmatpush1.msra.mxu0 0.0
  %2242 = vmatprep.subr.mxu0 0.0
  %2243 = vmatpush1.msra.mxu0 0.0
  %2244 = vmatprep.subr.mxu0 0.0
  %2245 = vmatpush1.msra.mxu0 0.0
  %2246 = vmatprep.subr.mxu0 0.0
  %2247 = vmatpush1.msra.mxu0 0.0
  %2248 = vmatprep.subr.mxu0 0.0
  %2249 = vmatpush1.msra.mxu0 0.0
  %2250 = vmatprep.mubr.f32.mxu0 0.0
  %2251 = vmatmul.mubr.f32.gmra.mrb[0].mxu0 %v2184
  %v2252 = vpop.f32.mrb[0].mxu0
  %v2253 = vadd.f32 %v394, %v2252
  %v2254 = vpop.f32.mrb[0].mxu0
  %2255 = vdwg.mxu0
  %2257 = vrot.lane.b32.xlu0 %v2180, 32
  %v2258 = vpop.permute.xlu0 %2257
  %v2259 = vsel %vm191, %v2258, 0
  %2261 = vmatprep.subr.mxu0 0.0
  %2262 = vmatpush1.msra.mxu0 %v31
  %2263 = vmatprep.subr.mxu0 0.0
  %2264 = vmatpush1.msra.mxu0 %v32
  %2265 = vmatprep.subr.mxu0 0.0
  %2266 = vmatpush1.msra.mxu0 %v33
  %2267 = vmatprep.subr.mxu0 0.0
  %2268 = vmatpush1.msra.mxu0 %v34
  %2269 = vmatprep.subr.mxu0 0.0
  %2270 = vmatpush1.msra.mxu0 0.0
  %2271 = vmatprep.subr.mxu0 0.0
  %2272 = vmatpush1.msra.mxu0 0.0
  %2273 = vmatprep.subr.mxu0 0.0
  %2274 = vmatpush1.msra.mxu0 0.0
  %2275 = vmatprep.subr.mxu0 0.0
  %2276 = vmatpush1.msra.mxu0 0.0
  %2277 = vmatprep.subr.mxu0 0.0
  %2278 = vmatpush1.msra.mxu0 0.0
  %2279 = vmatprep.subr.mxu0 0.0
  %2280 = vmatpush1.msra.mxu0 0.0
  %2281 = vmatprep.subr.mxu0 0.0
  %2282 = vmatpush1.msra.mxu0 0.0
  %2283 = vmatprep.subr.mxu0 0.0
  %2284 = vmatpush1.msra.mxu0 0.0
  %2285 = vmatprep.subr.mxu0 0.0
  %2286 = vmatpush1.msra.mxu0 0.0
  %2287 = vmatprep.subr.mxu0 0.0
  %2288 = vmatpush1.msra.mxu0 0.0
  %2289 = vmatprep.subr.mxu0 0.0
  %2290 = vmatpush1.msra.mxu0 0.0
  %2291 = vmatprep.subr.mxu0 0.0
  %2292 = vmatpush1.msra.mxu0 0.0
  %2293 = vmatprep.subr.mxu0 0.0
  %2294 = vmatpush1.msra.mxu0 0.0
  %2295 = vmatprep.subr.mxu0 0.0
  %2296 = vmatpush1.msra.mxu0 0.0
  %2297 = vmatprep.subr.mxu0 0.0
  %2298 = vmatpush1.msra.mxu0 0.0
  %2299 = vmatprep.subr.mxu0 0.0
  %2300 = vmatpush1.msra.mxu0 0.0
  %2301 = vmatprep.subr.mxu0 0.0
  %2302 = vmatpush1.msra.mxu0 0.0
  %2303 = vmatprep.subr.mxu0 0.0
  %2304 = vmatpush1.msra.mxu0 0.0
  %2305 = vmatprep.subr.mxu0 0.0
  %2306 = vmatpush1.msra.mxu0 0.0
  %2307 = vmatprep.subr.mxu0 0.0
  %2308 = vmatpush1.msra.mxu0 0.0
  %2309 = vmatprep.subr.mxu0 0.0
  %2310 = vmatpush1.msra.mxu0 0.0
  %2311 = vmatprep.subr.mxu0 0.0
  %2312 = vmatpush1.msra.mxu0 0.0
  %2313 = vmatprep.subr.mxu0 0.0
  %2314 = vmatpush1.msra.mxu0 0.0
  %2315 = vmatprep.subr.mxu0 0.0
  %2316 = vmatpush1.msra.mxu0 0.0
  %2317 = vmatprep.subr.mxu0 0.0
  %2318 = vmatpush1.msra.mxu0 0.0
  %2319 = vmatprep.subr.mxu0 0.0
  %2320 = vmatpush1.msra.mxu0 0.0
  %2321 = vmatprep.subr.mxu0 0.0
  %2322 = vmatpush1.msra.mxu0 0.0
  %2323 = vmatprep.subr.mxu0 0.0
  %2324 = vmatpush1.msra.mxu0 0.0
  %2325 = vmatprep.mubr.f32.mxu0 0.0
  %2326 = vmatmul.mubr.f32.gmra.mrb[0].mxu0 %v2259
  %v2327 = vpop.f32.mrb[0].mxu0
  %v2328 = vadd.f32 0.0, %v2327
  %v2329 = vpop.f32.mrb[0].mxu0
  %2330 = vdwg.mxu0
  %v2331 = vadd.f32 %v2253, %v2328
  %v2332 = vxor.u32 %v2331, 2147483648
  %v2333 = vmul.f32 %v2332, 1.442695
  %v2334 = vpow.pop %v2333
  %v2335 = vadd.f32 %v2334, 1.0
  %v2336 = vrcp.pop %v2335
  %v2337 = vmul.f32 1.0, %v2336
  %v2338 = vtanh.pop %v2331
  %v2339 = vmul.f32 %v2337, %v2174
  %2341 = vrot.lane.b32.xlu0 %v2338, 64
  %v2342 = vpop.permute.xlu0 %2341
  %v2344 = vmul.f32 %v2337, %v2342
  %2346 = vrot.lane.b32.xlu0 %v2344, 32
  %v2347 = vpop.permute.xlu0 %2346
  %v2349 = vadd.f32 %v2339, %v2347
  %v2350 = vtanh.pop %v2349
  %2352 = vrot.lane.b32.xlu0 %v2350, 64
  %v2353 = vpop.permute.xlu0 %2352
  %v2355 = vmul.f32 %v2337, %v2353
  %v2356 = vld [vmem:[%s5] sm:$0xff]
  %v2357 = vld [vmem:[%s5 + $0x8] sm:$0xff]
  %v2358 = vld [vmem:[%s5 + $0x10] sm:$0xff]
  %v2359 = vld [vmem:[%s5 + $0x18] sm:$0xff]
  %v2360 = vld [vmem:[%s6] sm:$0x1]
  %v2362 = vlaneseq
  %v2363 = vshrl.u32 %v2362, 7
  %v2364 = vsub.s32 0, %v2363
  %v2365 = vrot.slane %v2360, %v2364
  %2368 = vrot.lane.b32.xlu0 %v2355, 32
  %v2369 = vpop.permute.xlu0 %2368
  %v2370 = vsel %vm191, %v2369, 0
  %2372 = vmatprep.subr.mxu0 0.0
  %2373 = vmatpush1.msra.mxu0 %v2356
  %2374 = vmatprep.subr.mxu0 0.0
  %2375 = vmatpush1.msra.mxu0 %v2357
  %2376 = vmatprep.subr.mxu0 0.0
  %2377 = vmatpush1.msra.mxu0 %v2358
  %2378 = vmatprep.subr.mxu0 0.0
  %2379 = vmatpush1.msra.mxu0 %v2359
  %2380 = vmatprep.subr.mxu0 0.0
  %2381 = vmatpush1.msra.mxu0 0.0
  %2382 = vmatprep.subr.mxu0 0.0
  %2383 = vmatpush1.msra.mxu0 0.0
  %2384 = vmatprep.subr.mxu0 0.0
  %2385 = vmatpush1.msra.mxu0 0.0
  %2386 = vmatprep.subr.mxu0 0.0
  %2387 = vmatpush1.msra.mxu0 0.0
  %2388 = vmatprep.subr.mxu0 0.0
  %2389 = vmatpush1.msra.mxu0 0.0
  %2390 = vmatprep.subr.mxu0 0.0
  %2391 = vmatpush1.msra.mxu0 0.0
  %2392 = vmatprep.subr.mxu0 0.0
  %2393 = vmatpush1.msra.mxu0 0.0
  %2394 = vmatprep.subr.mxu0 0.0
  %2395 = vmatpush1.msra.mxu0 0.0
  %2396 = vmatprep.subr.mxu0 0.0
  %2397 = vmatpush1.msra.mxu0 0.0
  %2398 = vmatprep.subr.mxu0 0.0
  %2399 = vmatpush1.msra.mxu0 0.0
  %2400 = vmatprep.subr.mxu0 0.0
  %2401 = vmatpush1.msra.mxu0 0.0
  %2402 = vmatprep.subr.mxu0 0.0
  %2403 = vmatpush1.msra.mxu0 0.0
  %2404 = vmatprep.subr.mxu0 0.0
  %2405 = vmatpush1.msra.mxu0 0.0
  %2406 = vmatprep.subr.mxu0 0.0
  %2407 = vmatpush1.msra.mxu0 0.0
  %2408 = vmatprep.subr.mxu0 0.0
  %2409 = vmatpush1.msra.mxu0 0.0
  %2410 = vmatprep.subr.mxu0 0.0
  %2411 = vmatpush1.msra.mxu0 0.0
  %2412 = vmatprep.subr.mxu0 0.0
  %2413 = vmatpush1.msra.mxu0 0.0
  %2414 = vmatprep.subr.mxu0 0.0
  %2415 = vmatpush1.msra.mxu0 0.0
  %2416 = vmatprep.subr.mxu0 0.0
  %2417 = vmatpush1.msra.mxu0 0.0
  %2418 = vmatprep.subr.mxu0 0.0
  %2419 = vmatpush1.msra.mxu0 0.0
  %2420 = vmatprep.subr.mxu0 0.0
  %2421 = vmatpush1.msra.mxu0 0.0
  %2422 = vmatprep.subr.mxu0 0.0
  %2423 = vmatpush1.msra.mxu0 0.0
  %2424 = vmatprep.subr.mxu0 0.0
  %2425 = vmatpush1.msra.mxu0 0.0
  %2426 = vmatprep.subr.mxu0 0.0
  %2427 = vmatpush1.msra.mxu0 0.0
  %2428 = vmatprep.subr.mxu0 0.0
  %2429 = vmatpush1.msra.mxu0 0.0
  %2430 = vmatprep.subr.mxu0 0.0
  %2431 = vmatpush1.msra.mxu0 0.0
  %2432 = vmatprep.subr.mxu0 0.0
  %2433 = vmatpush1.msra.mxu0 0.0
  %2434 = vmatprep.subr.mxu0 0.0
  %2435 = vmatpush1.msra.mxu0 0.0
  %2436 = vmatprep.mubr.f32.mxu0 0.0
  %2437 = vmatmul.mubr.f32.gmra.mrb[0].mxu0 %v2370
  %v2438 = vpop.f32.mrb[0].mxu0
  %v2439 = vadd.f32 %v2365, %v2438
  %v2440 = vpop.f32.mrb[0].mxu0
  %2441 = vdwg.mxu0
  %vm2442 = vcmask 23552
  %2443 = vst.msk [vmem:[%s7] sm:$0xff] %vm2442, %v2439
  // Predicated region
  $region30: #{lstm_model_forward.1} parent=0 // pred_check
    _
  $region31: #{lstm_model_forward.1} parent=0 // pred_check_branch
    %2445 = sbr.rel (0) target = $region33
  $region32: #{lstm_model_forward.1} parent=0 // pred_region
    _
  $region33: #{lstm_model_forward.1} parent=0 // pred_fallthru
    _
  // Predicated region
  $region34: #{lstm_model_forward.1} parent=0 // pred_check
    _
  $region35: #{lstm_model_forward.1} parent=0 // pred_check_branch
    %2447 = sbr.rel (0) target = $region37
  $region36: #{lstm_model_forward.1} parent=0 // pred_region
    _
  $region37: #{lstm_model_forward.1} parent=0 // pred_fallthru
    _

</llo_original>
